<compile_context>
chip_gen: v6e
topology: v6e:2x2x1
jax: 0.10.0
libtpu: 0.0.40
codegen_flags: <defaults>
</compile_context>

<pallas_src>
import functools

import jax
import jax.numpy as jnp
from jax import lax
from jax.experimental import pallas as pl
from jax.experimental.pallas import tpu as pltpu


def _basic_block_kernel(x_ref, w1h_ref, w1w_ref, w2h_ref, w2w_ref,
                        s1_ref, b1_ref, s2_ref, b2_ref, out_ref,
                        *, width, img_len, op_dtype):
    # x_ref/out_ref: (C, N)  lane-folded activations, N = images_per_step*H*W,
    #                        lane index = b*H*W + h*W + w
    # w*_ref:        (3, C, C)  per-tap conv weights, tap 0 = "-1" offset
    # s*/b*:         (C, 1)     folded BN scale / bias
    C, N = out_ref.shape
    W = width
    L = img_len

    # Per-image boundary masks, (1, N) and broadcast at use.  Because blocks
    # always start at an image boundary (N is a multiple of L), the masks are
    # identical for every grid step.
    lane = lax.broadcasted_iota(jnp.int32, (1, N), 1)
    in_img = lane % L                       # flat position within one image
    col = in_img % W                        # column within the row
    not_first_col = col != 0
    not_last_col = col != (W - 1)
    not_first_row = in_img >= W
    not_last_row = in_img < (L - W)

    def conv3(t, w_ref, along_h):
        # 3-tap conv (along H or W) entirely in registers:
        # shifted taps via lane-roll (+ edge masks, since roll wraps) and
        # three accumulating (C,C) @ (C,N) MXU dots.
        if along_h:
            lo = jnp.where(not_first_row, pltpu.roll(t, shift=W, axis=1), 0.0)
            hi = jnp.where(not_last_row, pltpu.roll(t, shift=N - W, axis=1), 0.0)
        else:
            lo = jnp.where(not_first_col, pltpu.roll(t, shift=1, axis=1), 0.0)
            hi = jnp.where(not_last_col, pltpu.roll(t, shift=N - 1, axis=1), 0.0)
        acc = jnp.dot(w_ref[0].astype(op_dtype), lo.astype(op_dtype),
                      preferred_element_type=jnp.float32)
        acc = acc + jnp.dot(w_ref[1].astype(op_dtype), t.astype(op_dtype),
                            preferred_element_type=jnp.float32)
        acc = acc + jnp.dot(w_ref[2].astype(op_dtype), hi.astype(op_dtype),
                            preferred_element_type=jnp.float32)
        return acc

    x = x_ref[...].astype(jnp.float32)
    t = conv3(x, w1h_ref, along_h=True)                   # conv1    (3x1)
    t = conv3(t, w1w_ref, along_h=False)                  # conv1_1  (1x3)
    t = jnp.maximum(t * s1_ref[...] + b1_ref[...], 0.0)   # bn1 + ReLU
    t = conv3(t, w2h_ref, along_h=True)                   # conv2    (3x1)
    t = conv3(t, w2w_ref, along_h=False)                  # conv2_2  (1x3)
    t = t * s2_ref[...] + b2_ref[...]                     # bn2
    # Re-read the residual (don't hold x live across the four convs).
    res = x_ref[...].astype(jnp.float32)
    out_ref[...] = jnp.maximum(t + res, 0.0).astype(out_ref.dtype)


def basic_block_modified_pallas(x_nchw, w_conv1, w_conv1_1, w_conv2, w_conv2_2,
                                bn1, bn2, eps=1e-5, images_per_step=None,
                                use_bf16_matmul=False):
    """x_nchw: (B, C, H, W) like PyTorch.  Requires inplanes == planes,
    stride=1, dilation=1, no downsample (identity residual)."""
    B, Cin, H, W = x_nchw.shape
    C = w_conv1.shape[0]
    assert Cin == C, "identity residual requires inplanes == planes"
    L = H * W

    def fold_bn(p):
        gamma, beta, mean, var = p
        s = gamma / jnp.sqrt(var + eps)
        b = beta - mean * s
        return (s.reshape(C, 1).astype(jnp.float32),
                b.reshape(C, 1).astype(jnp.float32))

    def pack(w):
        # (C_out, C_in, kh, kw) with one kernel dim == 1 -> (3, C_out, C_in),
        # tap 0 = "-1" spatial offset (matches padding=1 conv semantics).
        co, ci = w.shape[0], w.shape[1]
        w3 = w.reshape(co, ci, 3)
        return jnp.transpose(w3, (2, 0, 1)).astype(jnp.float32)

    s1, b1 = fold_bn(bn1)
    s2, b2 = fold_bn(bn2)

    # Pick how many whole images go into one grid step: keep the lane slab
    # reasonably large (amortize per-step overhead / grow MXU N) while leaving
    # >= 2 grid steps for megacore splitting of the "parallel" axis.
    if images_per_step is None:
        images_per_step = 1
        for d in range(1, B + 1):
            if B % d == 0 and d * L <= 2048 and (B // d >= 2 or B < 2):
                images_per_step = d
    assert B % images_per_step == 0
    if (images_per_step * L) % 128 != 0:
        images_per_step = B   # non-lane-aligned block: fall back to full batch
    n_lanes = images_per_step * L
    grid = (B // images_per_step,)

    # Lane-fold the batch: (B, C, H, W) -> (C, B*H*W).  Layout plumbing only.
    x_cl = jnp.transpose(x_nchw.reshape(B, C, L), (1, 0, 2)).reshape(C, B * L)

    kernel = functools.partial(
        _basic_block_kernel, width=W, img_len=L,
        op_dtype=jnp.bfloat16 if use_bf16_matmul else jnp.float32)

    grid_spec = pltpu.PrefetchScalarGridSpec(
        num_scalar_prefetch=0,
        grid=grid,
        in_specs=[
            pl.BlockSpec((C, n_lanes), lambda i: (0, i)),
            pl.BlockSpec((3, C, C), lambda i: (0, 0, 0)),
            pl.BlockSpec((3, C, C), lambda i: (0, 0, 0)),
            pl.BlockSpec((3, C, C), lambda i: (0, 0, 0)),
            pl.BlockSpec((3, C, C), lambda i: (0, 0, 0)),
            pl.BlockSpec((C, 1), lambda i: (0, 0)),
            pl.BlockSpec((C, 1), lambda i: (0, 0)),
            pl.BlockSpec((C, 1), lambda i: (0, 0)),
            pl.BlockSpec((C, 1), lambda i: (0, 0)),
        ],
        out_specs=pl.BlockSpec((C, n_lanes), lambda i: (0, i)),
    )

    out_cl = pl.pallas_call(
        kernel,
        out_shape=jax.ShapeDtypeStruct((C, B * L), x_nchw.dtype),
        grid_spec=grid_spec,
        compiler_params=pltpu.CompilerParams(
            dimension_semantics=("parallel",)),
    )(x_cl, pack(w_conv1), pack(w_conv1_1), pack(w_conv2), pack(w_conv2_2),
      s1, b1, s2, b2)

    return jnp.transpose(out_cl.reshape(C, B, L), (1, 0, 2)).reshape(B, C, H, W)


def basic_block_modified_reference(x, w1a, w1b, w2a, w2b, bn1, bn2, eps=1e-5):
    """Pure-JAX reference (PyTorch NCHW/OIHW conv semantics, inference BN)."""
    dn = ("NCHW", "OIHW", "NCHW")

    def conv(z, w, pad):
        return lax.conv_general_dilated(z, w, window_strides=(1, 1),
                                        padding=pad, dimension_numbers=dn)

    def bn(z, p):
        gamma, beta, mean, var = p
        g = gamma.reshape(1, -1, 1, 1)
        b = beta.reshape(1, -1, 1, 1)
        m = mean.reshape(1, -1, 1, 1)
        v = var.reshape(1, -1, 1, 1)
        return (z - m) / jnp.sqrt(v + eps) * g + b

    out = conv(x, w1a, ((1, 1), (0, 0)))        # conv3x1
    out = conv(out, w1b, ((0, 0), (1, 1)))      # conv1x3
    out = jax.nn.relu(bn(out, bn1))
    out = conv(out, w2a, ((1, 1), (0, 0)))      # conv3x1
    out = conv(out, w2b, ((0, 0), (1, 1)))      # conv1x3
    out = bn(out, bn2)
    return jax.nn.relu(out + x)


if __name__ == "__main__":
    key = jax.random.PRNGKey(0)
    B, C, H, W = 2, 4, 16, 16  # inplanes == planes == 4, stride=1, dilation=1
    k = jax.random.split(key, 10)

    # Input and weights in PyTorch conventions (NCHW / OIHW).
    x = jax.random.normal(k[0], (B, C, H, W), jnp.float32)
    w_conv1 = 0.1 * jax.random.normal(k[1], (C, C, 3, 1), jnp.float32)    # conv3x1
    w_conv1_1 = 0.1 * jax.random.normal(k[2], (C, C, 1, 3), jnp.float32)  # conv1x3
    w_conv2 = 0.1 * jax.random.normal(k[3], (C, C, 3, 1), jnp.float32)    # conv3x1
    w_conv2_2 = 0.1 * jax.random.normal(k[4], (C, C, 1, 3), jnp.float32)  # conv1x3

    # BatchNorm params (gamma, beta, running_mean, running_var) — eval form.
    bn1 = (1.0 + 0.1 * jax.random.normal(k[5], (C,), jnp.float32),
           0.1 * jax.random.normal(k[6], (C,), jnp.float32),
           0.1 * jax.random.normal(k[7], (C,), jnp.float32),
           1.0 + 0.1 * jax.random.uniform(k[8], (C,), jnp.float32))
    bn2 = (jnp.ones((C,), jnp.float32),
           jnp.zeros((C,), jnp.float32),
           0.05 * jax.random.normal(k[9], (C,), jnp.float32),
           jnp.ones((C,), jnp.float32))

    out = basic_block_modified_pallas(x, w_conv1, w_conv1_1, w_conv2, w_conv2_2,
                                      bn1, bn2)
    out = jax.block_until_ready(out)

    ref = basic_block_modified_reference(x, w_conv1, w_conv1_1, w_conv2,
                                         w_conv2_2, bn1, bn2)
    assert out.shape == (B, C, H, W)
    assert jnp.allclose(out, ref, atol=1e-4, rtol=1e-4), "mismatch vs reference"

    print("KERNEL_OK")
</pallas_src>

<mosaic_0001>
module attributes {stable_mosaic.version = 11 : i64} {
  func.func @_basic_block_kernel(%arg0: i32, %arg1: memref<4x256xf32, #tpu.memory_space<vmem>>, %arg2: memref<3x4x4xf32, #tpu.memory_space<vmem>>, %arg3: memref<3x4x4xf32, #tpu.memory_space<vmem>>, %arg4: memref<3x4x4xf32, #tpu.memory_space<vmem>>, %arg5: memref<3x4x4xf32, #tpu.memory_space<vmem>>, %arg6: memref<4x1xf32, #tpu.memory_space<vmem>>, %arg7: memref<4x1xf32, #tpu.memory_space<vmem>>, %arg8: memref<4x1xf32, #tpu.memory_space<vmem>>, %arg9: memref<4x1xf32, #tpu.memory_space<vmem>>, %arg10: memref<4x256xf32, #tpu.memory_space<vmem>>) attributes {dimension_semantics = [#tpu.dimension_semantics<parallel>], iteration_bounds = array<i64: 2>, scalar_prefetch = 0 : i64, scratch_operands = 0 : i64, tpu.core_type = #tpu.core_type<tc>, window_params = [{transform_indices = @transform_0, window_bounds = array<i64: 4, 256>}, {pipeline_mode = #tpu.pipeline_mode<synchronous>, transform_indices = @transform_1, window_bounds = array<i64: 3, 4, 4>}, {pipeline_mode = #tpu.pipeline_mode<synchronous>, transform_indices = @transform_2, window_bounds = array<i64: 3, 4, 4>}, {pipeline_mode = #tpu.pipeline_mode<synchronous>, transform_indices = @transform_3, window_bounds = array<i64: 3, 4, 4>}, {pipeline_mode = #tpu.pipeline_mode<synchronous>, transform_indices = @transform_4, window_bounds = array<i64: 3, 4, 4>}, {pipeline_mode = #tpu.pipeline_mode<synchronous>, transform_indices = @transform_5, window_bounds = array<i64: 4, 1>}, {pipeline_mode = #tpu.pipeline_mode<synchronous>, transform_indices = @transform_6, window_bounds = array<i64: 4, 1>}, {pipeline_mode = #tpu.pipeline_mode<synchronous>, transform_indices = @transform_7, window_bounds = array<i64: 4, 1>}, {pipeline_mode = #tpu.pipeline_mode<synchronous>, transform_indices = @transform_8, window_bounds = array<i64: 4, 1>}, {transform_indices = @transform_9, window_bounds = array<i64: 4, 256>}]} {
    %0 = tpu.iota {dimensions = array<i32: 1>} : vector<1x256xi32>
    %c256_i32 = arith.constant 256 : i32
    %c0_i32 = arith.constant 0 : i32
    %1 = arith.cmpi eq, %c256_i32, %c0_i32 : i32
    %c1_i32 = arith.constant 1 : i32
    %2 = arith.select %1, %c1_i32, %c256_i32 : i32
    %3 = vector.broadcast %2 : i32 to vector<1x256xi32>
    %4 = arith.remsi %0, %3 : vector<1x256xi32>
    %c0_i32_0 = arith.constant 0 : i32
    %5 = vector.broadcast %c0_i32_0 : i32 to vector<1x256xi32>
    %6 = arith.cmpi ne, %4, %5 : vector<1x256xi32>
    %c0_i32_1 = arith.constant 0 : i32
    %7 = vector.broadcast %c0_i32_1 : i32 to vector<1x256xi32>
    %8 = arith.cmpi slt, %4, %7 : vector<1x256xi32>
    %c0_i32_2 = arith.constant 0 : i32
    %9 = arith.cmpi slt, %2, %c0_i32_2 : i32
    %10 = vector.broadcast %9 : i1 to vector<1x256xi1>
    %11 = vector.broadcast %10 : vector<1x256xi1> to vector<1x256xi1>
    %12 = arith.xori %8, %11 : vector<1x256xi1>
    %13 = arith.andi %12, %6 : vector<1x256xi1>
    %14 = vector.broadcast %2 : i32 to vector<1x256xi32>
    %15 = arith.addi %4, %14 : vector<1x256xi32>
    %16 = arith.select %13, %15, %4 : vector<1x256xi1>, vector<1x256xi32>
    %c16_i32 = arith.constant 16 : i32
    %c0_i32_3 = arith.constant 0 : i32
    %17 = arith.cmpi eq, %c16_i32, %c0_i32_3 : i32
    %c1_i32_4 = arith.constant 1 : i32
    %18 = arith.select %17, %c1_i32_4, %c16_i32 : i32
    %19 = vector.broadcast %18 : i32 to vector<1x256xi32>
    %20 = arith.remsi %16, %19 : vector<1x256xi32>
    %c0_i32_5 = arith.constant 0 : i32
    %21 = vector.broadcast %c0_i32_5 : i32 to vector<1x256xi32>
    %22 = arith.cmpi ne, %20, %21 : vector<1x256xi32>
    %c0_i32_6 = arith.constant 0 : i32
    %23 = vector.broadcast %c0_i32_6 : i32 to vector<1x256xi32>
    %24 = arith.cmpi slt, %20, %23 : vector<1x256xi32>
    %c0_i32_7 = arith.constant 0 : i32
    %25 = arith.cmpi slt, %18, %c0_i32_7 : i32
    %26 = vector.broadcast %25 : i1 to vector<1x256xi1>
    %27 = vector.broadcast %26 : vector<1x256xi1> to vector<1x256xi1>
    %28 = arith.xori %24, %27 : vector<1x256xi1>
    %29 = arith.andi %28, %22 : vector<1x256xi1>
    %30 = vector.broadcast %18 : i32 to vector<1x256xi32>
    %31 = arith.addi %20, %30 : vector<1x256xi32>
    %32 = arith.select %29, %31, %20 : vector<1x256xi1>, vector<1x256xi32>
    %c0_i32_8 = arith.constant 0 : i32
    %33 = vector.broadcast %c0_i32_8 : i32 to vector<1x256xi32>
    %34 = arith.cmpi ne, %32, %33 : vector<1x256xi32>
    %c15_i32 = arith.constant 15 : i32
    %35 = vector.broadcast %c15_i32 : i32 to vector<1x256xi32>
    %36 = arith.cmpi ne, %32, %35 : vector<1x256xi32>
    %c16_i32_9 = arith.constant 16 : i32
    %37 = vector.broadcast %c16_i32_9 : i32 to vector<1x256xi32>
    %38 = arith.cmpi sge, %16, %37 : vector<1x256xi32>
    %c240_i32 = arith.constant 240 : i32
    %39 = vector.broadcast %c240_i32 : i32 to vector<1x256xi32>
    %40 = arith.cmpi slt, %16, %39 : vector<1x256xi32>
    %c0 = arith.constant 0 : index
    %c0_10 = arith.constant 0 : index
    %41 = vector.load %arg1[%c0, %c0_10] : memref<4x256xf32, #tpu.memory_space<vmem>>, vector<4x256xf32>
    %c16_i32_11 = arith.constant 16 : i32
    %42 = tpu.dynamic_rotate %41 by %c16_i32_11 dim 1 : vector<4x256xf32>, i32 -> vector<4x256xf32>
    %cst = arith.constant 0.000000e+00 : f32
    %43 = vector.shape_cast %38 : vector<1x256xi1> to vector<1x256xi1>
    %44 = vector.broadcast %43 : vector<1x256xi1> to vector<4x256xi1>
    %45 = vector.broadcast %cst : f32 to vector<4x256xf32>
    %46 = arith.select %44, %42, %45 : vector<4x256xi1>, vector<4x256xf32>
    %c240_i32_12 = arith.constant 240 : i32
    %47 = tpu.dynamic_rotate %41 by %c240_i32_12 dim 1 : vector<4x256xf32>, i32 -> vector<4x256xf32>
    %cst_13 = arith.constant 0.000000e+00 : f32
    %48 = vector.shape_cast %40 : vector<1x256xi1> to vector<1x256xi1>
    %49 = vector.broadcast %48 : vector<1x256xi1> to vector<4x256xi1>
    %50 = vector.broadcast %cst_13 : f32 to vector<4x256xf32>
    %51 = arith.select %49, %47, %50 : vector<4x256xi1>, vector<4x256xf32>
    %c0_14 = arith.constant 0 : index
    %c0_15 = arith.constant 0 : index
    %c0_16 = arith.constant 0 : index
    %52 = vector.load %arg2[%c0_14, %c0_15, %c0_16] : memref<3x4x4xf32, #tpu.memory_space<vmem>>, vector<1x4x4xf32>
    %53 = vector.shape_cast %52 : vector<1x4x4xf32> to vector<4x4xf32>
    %cst_17 = arith.constant dense<0.000000e+00> : vector<4x256xf32>
    %54 = tpu.matmul %53, %46, %cst_17 {dimension_numbers = #tpu.dot_dimension_numbers<[1], [0], [0], [1], [0, 0, 1, 1], [], []>} : vector<4x4xf32>, vector<4x256xf32>, vector<4x256xf32> -> vector<4x256xf32>
    %c1 = arith.constant 1 : index
    %c0_18 = arith.constant 0 : index
    %c0_19 = arith.constant 0 : index
    %55 = vector.load %arg2[%c1, %c0_18, %c0_19] : memref<3x4x4xf32, #tpu.memory_space<vmem>>, vector<1x4x4xf32>
    %56 = vector.shape_cast %55 : vector<1x4x4xf32> to vector<4x4xf32>
    %cst_20 = arith.constant dense<0.000000e+00> : vector<4x256xf32>
    %57 = tpu.matmul %56, %41, %cst_20 {dimension_numbers = #tpu.dot_dimension_numbers<[1], [0], [0], [1], [0, 0, 1, 1], [], []>} : vector<4x4xf32>, vector<4x256xf32>, vector<4x256xf32> -> vector<4x256xf32>
    %58 = arith.addf %54, %57 : vector<4x256xf32>
    %c2 = arith.constant 2 : index
    %c0_21 = arith.constant 0 : index
    %c0_22 = arith.constant 0 : index
    %59 = vector.load %arg2[%c2, %c0_21, %c0_22] : memref<3x4x4xf32, #tpu.memory_space<vmem>>, vector<1x4x4xf32>
    %60 = vector.shape_cast %59 : vector<1x4x4xf32> to vector<4x4xf32>
    %cst_23 = arith.constant dense<0.000000e+00> : vector<4x256xf32>
    %61 = tpu.matmul %60, %51, %cst_23 {dimension_numbers = #tpu.dot_dimension_numbers<[1], [0], [0], [1], [0, 0, 1, 1], [], []>} : vector<4x4xf32>, vector<4x256xf32>, vector<4x256xf32> -> vector<4x256xf32>
    %62 = arith.addf %58, %61 : vector<4x256xf32>
    %c1_i32_24 = arith.constant 1 : i32
    %63 = tpu.dynamic_rotate %62 by %c1_i32_24 dim 1 : vector<4x256xf32>, i32 -> vector<4x256xf32>
    %cst_25 = arith.constant 0.000000e+00 : f32
    %64 = vector.shape_cast %34 : vector<1x256xi1> to vector<1x256xi1>
    %65 = vector.broadcast %64 : vector<1x256xi1> to vector<4x256xi1>
    %66 = vector.broadcast %cst_25 : f32 to vector<4x256xf32>
    %67 = arith.select %65, %63, %66 : vector<4x256xi1>, vector<4x256xf32>
    %c255_i32 = arith.constant 255 : i32
    %68 = tpu.dynamic_rotate %62 by %c255_i32 dim 1 : vector<4x256xf32>, i32 -> vector<4x256xf32>
    %cst_26 = arith.constant 0.000000e+00 : f32
    %69 = vector.shape_cast %36 : vector<1x256xi1> to vector<1x256xi1>
    %70 = vector.broadcast %69 : vector<1x256xi1> to vector<4x256xi1>
    %71 = vector.broadcast %cst_26 : f32 to vector<4x256xf32>
    %72 = arith.select %70, %68, %71 : vector<4x256xi1>, vector<4x256xf32>
    %c0_27 = arith.constant 0 : index
    %c0_28 = arith.constant 0 : index
    %c0_29 = arith.constant 0 : index
    %73 = vector.load %arg3[%c0_27, %c0_28, %c0_29] : memref<3x4x4xf32, #tpu.memory_space<vmem>>, vector<1x4x4xf32>
    %74 = vector.shape_cast %73 : vector<1x4x4xf32> to vector<4x4xf32>
    %cst_30 = arith.constant dense<0.000000e+00> : vector<4x256xf32>
    %75 = tpu.matmul %74, %67, %cst_30 {dimension_numbers = #tpu.dot_dimension_numbers<[1], [0], [0], [1], [0, 0, 1, 1], [], []>} : vector<4x4xf32>, vector<4x256xf32>, vector<4x256xf32> -> vector<4x256xf32>
    %c1_31 = arith.constant 1 : index
    %c0_32 = arith.constant 0 : index
    %c0_33 = arith.constant 0 : index
    %76 = vector.load %arg3[%c1_31, %c0_32, %c0_33] : memref<3x4x4xf32, #tpu.memory_space<vmem>>, vector<1x4x4xf32>
    %77 = vector.shape_cast %76 : vector<1x4x4xf32> to vector<4x4xf32>
    %cst_34 = arith.constant dense<0.000000e+00> : vector<4x256xf32>
    %78 = tpu.matmul %77, %62, %cst_34 {dimension_numbers = #tpu.dot_dimension_numbers<[1], [0], [0], [1], [0, 0, 1, 1], [], []>} : vector<4x4xf32>, vector<4x256xf32>, vector<4x256xf32> -> vector<4x256xf32>
    %79 = arith.addf %75, %78 : vector<4x256xf32>
    %c2_35 = arith.constant 2 : index
    %c0_36 = arith.constant 0 : index
    %c0_37 = arith.constant 0 : index
    %80 = vector.load %arg3[%c2_35, %c0_36, %c0_37] : memref<3x4x4xf32, #tpu.memory_space<vmem>>, vector<1x4x4xf32>
    %81 = vector.shape_cast %80 : vector<1x4x4xf32> to vector<4x4xf32>
    %cst_38 = arith.constant dense<0.000000e+00> : vector<4x256xf32>
    %82 = tpu.matmul %81, %72, %cst_38 {dimension_numbers = #tpu.dot_dimension_numbers<[1], [0], [0], [1], [0, 0, 1, 1], [], []>} : vector<4x4xf32>, vector<4x256xf32>, vector<4x256xf32> -> vector<4x256xf32>
    %83 = arith.addf %79, %82 : vector<4x256xf32>
    %c0_39 = arith.constant 0 : index
    %c0_40 = arith.constant 0 : index
    %84 = vector.load %arg6[%c0_39, %c0_40] : memref<4x1xf32, #tpu.memory_space<vmem>>, vector<4x1xf32>
    %85 = vector.broadcast %84 : vector<4x1xf32> to vector<4x256xf32>
    %86 = arith.mulf %83, %85 : vector<4x256xf32>
    %c0_41 = arith.constant 0 : index
    %c0_42 = arith.constant 0 : index
    %87 = vector.load %arg7[%c0_41, %c0_42] : memref<4x1xf32, #tpu.memory_space<vmem>>, vector<4x1xf32>
    %88 = vector.broadcast %87 : vector<4x1xf32> to vector<4x256xf32>
    %89 = arith.addf %86, %88 : vector<4x256xf32>
    %cst_43 = arith.constant 0.000000e+00 : f32
    %90 = vector.broadcast %cst_43 : f32 to vector<4x256xf32>
    %91 = arith.maximumf %89, %90 : vector<4x256xf32>
    %c16_i32_44 = arith.constant 16 : i32
    %92 = tpu.dynamic_rotate %91 by %c16_i32_44 dim 1 : vector<4x256xf32>, i32 -> vector<4x256xf32>
    %cst_45 = arith.constant 0.000000e+00 : f32
    %93 = vector.shape_cast %38 : vector<1x256xi1> to vector<1x256xi1>
    %94 = vector.broadcast %93 : vector<1x256xi1> to vector<4x256xi1>
    %95 = vector.broadcast %cst_45 : f32 to vector<4x256xf32>
    %96 = arith.select %94, %92, %95 : vector<4x256xi1>, vector<4x256xf32>
    %c240_i32_46 = arith.constant 240 : i32
    %97 = tpu.dynamic_rotate %91 by %c240_i32_46 dim 1 : vector<4x256xf32>, i32 -> vector<4x256xf32>
    %cst_47 = arith.constant 0.000000e+00 : f32
    %98 = vector.shape_cast %40 : vector<1x256xi1> to vector<1x256xi1>
    %99 = vector.broadcast %98 : vector<1x256xi1> to vector<4x256xi1>
    %100 = vector.broadcast %cst_47 : f32 to vector<4x256xf32>
    %101 = arith.select %99, %97, %100 : vector<4x256xi1>, vector<4x256xf32>
    %c0_48 = arith.constant 0 : index
    %c0_49 = arith.constant 0 : index
    %c0_50 = arith.constant 0 : index
    %102 = vector.load %arg4[%c0_48, %c0_49, %c0_50] : memref<3x4x4xf32, #tpu.memory_space<vmem>>, vector<1x4x4xf32>
    %103 = vector.shape_cast %102 : vector<1x4x4xf32> to vector<4x4xf32>
    %cst_51 = arith.constant dense<0.000000e+00> : vector<4x256xf32>
    %104 = tpu.matmul %103, %96, %cst_51 {dimension_numbers = #tpu.dot_dimension_numbers<[1], [0], [0], [1], [0, 0, 1, 1], [], []>} : vector<4x4xf32>, vector<4x256xf32>, vector<4x256xf32> -> vector<4x256xf32>
    %c1_52 = arith.constant 1 : index
    %c0_53 = arith.constant 0 : index
    %c0_54 = arith.constant 0 : index
    %105 = vector.load %arg4[%c1_52, %c0_53, %c0_54] : memref<3x4x4xf32, #tpu.memory_space<vmem>>, vector<1x4x4xf32>
    %106 = vector.shape_cast %105 : vector<1x4x4xf32> to vector<4x4xf32>
    %cst_55 = arith.constant dense<0.000000e+00> : vector<4x256xf32>
    %107 = tpu.matmul %106, %91, %cst_55 {dimension_numbers = #tpu.dot_dimension_numbers<[1], [0], [0], [1], [0, 0, 1, 1], [], []>} : vector<4x4xf32>, vector<4x256xf32>, vector<4x256xf32> -> vector<4x256xf32>
    %108 = arith.addf %104, %107 : vector<4x256xf32>
    %c2_56 = arith.constant 2 : index
    %c0_57 = arith.constant 0 : index
    %c0_58 = arith.constant 0 : index
    %109 = vector.load %arg4[%c2_56, %c0_57, %c0_58] : memref<3x4x4xf32, #tpu.memory_space<vmem>>, vector<1x4x4xf32>
    %110 = vector.shape_cast %109 : vector<1x4x4xf32> to vector<4x4xf32>
    %cst_59 = arith.constant dense<0.000000e+00> : vector<4x256xf32>
    %111 = tpu.matmul %110, %101, %cst_59 {dimension_numbers = #tpu.dot_dimension_numbers<[1], [0], [0], [1], [0, 0, 1, 1], [], []>} : vector<4x4xf32>, vector<4x256xf32>, vector<4x256xf32> -> vector<4x256xf32>
    %112 = arith.addf %108, %111 : vector<4x256xf32>
    %c1_i32_60 = arith.constant 1 : i32
    %113 = tpu.dynamic_rotate %112 by %c1_i32_60 dim 1 : vector<4x256xf32>, i32 -> vector<4x256xf32>
    %cst_61 = arith.constant 0.000000e+00 : f32
    %114 = vector.shape_cast %34 : vector<1x256xi1> to vector<1x256xi1>
    %115 = vector.broadcast %114 : vector<1x256xi1> to vector<4x256xi1>
    %116 = vector.broadcast %cst_61 : f32 to vector<4x256xf32>
    %117 = arith.select %115, %113, %116 : vector<4x256xi1>, vector<4x256xf32>
    %c255_i32_62 = arith.constant 255 : i32
    %118 = tpu.dynamic_rotate %112 by %c255_i32_62 dim 1 : vector<4x256xf32>, i32 -> vector<4x256xf32>
    %cst_63 = arith.constant 0.000000e+00 : f32
    %119 = vector.shape_cast %36 : vector<1x256xi1> to vector<1x256xi1>
    %120 = vector.broadcast %119 : vector<1x256xi1> to vector<4x256xi1>
    %121 = vector.broadcast %cst_63 : f32 to vector<4x256xf32>
    %122 = arith.select %120, %118, %121 : vector<4x256xi1>, vector<4x256xf32>
    %c0_64 = arith.constant 0 : index
    %c0_65 = arith.constant 0 : index
    %c0_66 = arith.constant 0 : index
    %123 = vector.load %arg5[%c0_64, %c0_65, %c0_66] : memref<3x4x4xf32, #tpu.memory_space<vmem>>, vector<1x4x4xf32>
    %124 = vector.shape_cast %123 : vector<1x4x4xf32> to vector<4x4xf32>
    %cst_67 = arith.constant dense<0.000000e+00> : vector<4x256xf32>
    %125 = tpu.matmul %124, %117, %cst_67 {dimension_numbers = #tpu.dot_dimension_numbers<[1], [0], [0], [1], [0, 0, 1, 1], [], []>} : vector<4x4xf32>, vector<4x256xf32>, vector<4x256xf32> -> vector<4x256xf32>
    %c1_68 = arith.constant 1 : index
    %c0_69 = arith.constant 0 : index
    %c0_70 = arith.constant 0 : index
    %126 = vector.load %arg5[%c1_68, %c0_69, %c0_70] : memref<3x4x4xf32, #tpu.memory_space<vmem>>, vector<1x4x4xf32>
    %127 = vector.shape_cast %126 : vector<1x4x4xf32> to vector<4x4xf32>
    %cst_71 = arith.constant dense<0.000000e+00> : vector<4x256xf32>
    %128 = tpu.matmul %127, %112, %cst_71 {dimension_numbers = #tpu.dot_dimension_numbers<[1], [0], [0], [1], [0, 0, 1, 1], [], []>} : vector<4x4xf32>, vector<4x256xf32>, vector<4x256xf32> -> vector<4x256xf32>
    %129 = arith.addf %125, %128 : vector<4x256xf32>
    %c2_72 = arith.constant 2 : index
    %c0_73 = arith.constant 0 : index
    %c0_74 = arith.constant 0 : index
    %130 = vector.load %arg5[%c2_72, %c0_73, %c0_74] : memref<3x4x4xf32, #tpu.memory_space<vmem>>, vector<1x4x4xf32>
    %131 = vector.shape_cast %130 : vector<1x4x4xf32> to vector<4x4xf32>
    %cst_75 = arith.constant dense<0.000000e+00> : vector<4x256xf32>
    %132 = tpu.matmul %131, %122, %cst_75 {dimension_numbers = #tpu.dot_dimension_numbers<[1], [0], [0], [1], [0, 0, 1, 1], [], []>} : vector<4x4xf32>, vector<4x256xf32>, vector<4x256xf32> -> vector<4x256xf32>
    %133 = arith.addf %129, %132 : vector<4x256xf32>
    %c0_76 = arith.constant 0 : index
    %c0_77 = arith.constant 0 : index
    %134 = vector.load %arg8[%c0_76, %c0_77] : memref<4x1xf32, #tpu.memory_space<vmem>>, vector<4x1xf32>
    %135 = vector.broadcast %134 : vector<4x1xf32> to vector<4x256xf32>
    %136 = arith.mulf %133, %135 : vector<4x256xf32>
    %c0_78 = arith.constant 0 : index
    %c0_79 = arith.constant 0 : index
    %137 = vector.load %arg9[%c0_78, %c0_79] : memref<4x1xf32, #tpu.memory_space<vmem>>, vector<4x1xf32>
    %138 = vector.broadcast %137 : vector<4x1xf32> to vector<4x256xf32>
    %139 = arith.addf %136, %138 : vector<4x256xf32>
    %c0_80 = arith.constant 0 : index
    %c0_81 = arith.constant 0 : index
    %140 = vector.load %arg1[%c0_80, %c0_81] : memref<4x256xf32, #tpu.memory_space<vmem>>, vector<4x256xf32>
    %141 = arith.addf %139, %140 : vector<4x256xf32>
    %cst_82 = arith.constant 0.000000e+00 : f32
    %142 = vector.broadcast %cst_82 : f32 to vector<4x256xf32>
    %143 = arith.maximumf %141, %142 : vector<4x256xf32>
    %c0_83 = arith.constant 0 : index
    %c0_84 = arith.constant 0 : index
    %144 = vector.load %arg10[%c0_83, %c0_84] : memref<4x256xf32, #tpu.memory_space<vmem>>, vector<4x256xf32>
    tpu.vector_store %arg10[%c0_83, %c0_84], %143 {strides = array<i32>} : memref<4x256xf32, #tpu.memory_space<vmem>>, vector<4x256xf32>,
    return
  }
  func.func @transform_0(%arg0: i32) -> (i32, i32) {
    %c0_i32 = arith.constant 0 : i32
    %c0_i32_0 = arith.constant 0 : i32
    return %c0_i32, %arg0 : i32, i32
  }
  func.func @transform_1(%arg0: i32) -> (i32, i32, i32) {
    %c0_i32 = arith.constant 0 : i32
    %c0_i32_0 = arith.constant 0 : i32
    %c0_i32_1 = arith.constant 0 : i32
    %c0_i32_2 = arith.constant 0 : i32
    return %c0_i32, %c0_i32_0, %c0_i32_1 : i32, i32, i32
  }
  func.func @transform_2(%arg0: i32) -> (i32, i32, i32) {
    %c0_i32 = arith.constant 0 : i32
    %c0_i32_0 = arith.constant 0 : i32
    %c0_i32_1 = arith.constant 0 : i32
    %c0_i32_2 = arith.constant 0 : i32
    return %c0_i32, %c0_i32_0, %c0_i32_1 : i32, i32, i32
  }
  func.func @transform_3(%arg0: i32) -> (i32, i32, i32) {
    %c0_i32 = arith.constant 0 : i32
    %c0_i32_0 = arith.constant 0 : i32
    %c0_i32_1 = arith.constant 0 : i32
    %c0_i32_2 = arith.constant 0 : i32
    return %c0_i32, %c0_i32_0, %c0_i32_1 : i32, i32, i32
  }
  func.func @transform_4(%arg0: i32) -> (i32, i32, i32) {
    %c0_i32 = arith.constant 0 : i32
    %c0_i32_0 = arith.constant 0 : i32
    %c0_i32_1 = arith.constant 0 : i32
    %c0_i32_2 = arith.constant 0 : i32
    return %c0_i32, %c0_i32_0, %c0_i32_1 : i32, i32, i32
  }
  func.func @transform_5(%arg0: i32) -> (i32, i32) {
    %c0_i32 = arith.constant 0 : i32
    %c0_i32_0 = arith.constant 0 : i32
    %c0_i32_1 = arith.constant 0 : i32
    return %c0_i32, %c0_i32_0 : i32, i32
  }
  func.func @transform_6(%arg0: i32) -> (i32, i32) {
    %c0_i32 = arith.constant 0 : i32
    %c0_i32_0 = arith.constant 0 : i32
    %c0_i32_1 = arith.constant 0 : i32
    return %c0_i32, %c0_i32_0 : i32, i32
  }
  func.func @transform_7(%arg0: i32) -> (i32, i32) {
    %c0_i32 = arith.constant 0 : i32
    %c0_i32_0 = arith.constant 0 : i32
    %c0_i32_1 = arith.constant 0 : i32
    return %c0_i32, %c0_i32_0 : i32, i32
  }
  func.func @transform_8(%arg0: i32) -> (i32, i32) {
    %c0_i32 = arith.constant 0 : i32
    %c0_i32_0 = arith.constant 0 : i32
    %c0_i32_1 = arith.constant 0 : i32
    return %c0_i32, %c0_i32_0 : i32, i32
  }
  func.func @transform_9(%arg0: i32) -> (i32, i32) {
    %c0_i32 = arith.constant 0 : i32
    %c0_i32_0 = arith.constant 0 : i32
    return %c0_i32, %arg0 : i32, i32
  }
}

</mosaic_0001>

<llo_original>
// kernel: tpu_custom_call.1
$region0: #{tpu_custom_call.1}
  #allocation0 [shape = 'u32[]', space=smem, size = 0x4, offset = 0x4, fixed_abs, tag = 'smem constant byte address 0x4 - core index']
  #allocation1 [shape = 'u32[144,128]{1,0:T(1,128)}', space=vmem, size = 0x12000, scoped, tag = 'internal scratch']
  %s0 = inlined_call_operand.vmem [shape: f32[4,512], index: 0, kind: input, shape index: {}]
  %s1 = inlined_call_operand.hbm [shape: f32[3,4,4], index: 1, kind: input, shape index: {}]
  %s2 = inlined_call_operand.hbm [shape: f32[3,4,4], index: 2, kind: input, shape index: {}]
  %s3 = inlined_call_operand.hbm [shape: f32[3,4,4], index: 3, kind: input, shape index: {}]
  %s4 = inlined_call_operand.hbm [shape: f32[3,4,4], index: 4, kind: input, shape index: {}]
  %s5 = inlined_call_operand.vmem [shape: f32[4,1], index: 5, kind: input, shape index: {}]
  %s6 = inlined_call_operand.vmem [shape: f32[4,1], index: 6, kind: input, shape index: {}]
  %s7 = inlined_call_operand.vmem [shape: f32[4,1], index: 7, kind: input, shape index: {}]
  %s8 = inlined_call_operand.vmem [shape: f32[4,1], index: 8, kind: input, shape index: {}]
  %s9 = inlined_call_operand.hbm [shape: f32[4,512], index: 9, kind: output, shape index: {}]
  %s10 = sld [smem:[#allocation0]]
  $region85: #{tpu_custom_call.1} parent=0
    _
  %s12 = ssub.s32 1, %s10
  %s13 = scalar_select 0, %s12, %s10
  $region1: #{tpu_custom_call.1} parent=0
    #allocation2 [shape = 'u8[6144]{0}', space=vmem, size = 0x1800, scoped, tag = 'input window, operand 1, single buffered']
    #allocation3 [shape = 's32[2]{0}', space=sflag, size = 0x8, scoped, tag = 'scoped memory for tpu_custom_call.1']
    #allocation4 [shape = 's32[2]{0}', space=sflag, size = 0x8, scoped, tag = 'scoped memory for tpu_custom_call.1']
    #allocation5 [shape = 'u8[6144]{0}', space=vmem, size = 0x1800, scoped, tag = 'input window, operand 2, single buffered']
    #allocation6 [shape = 's32[1]{0}', space=sflag, size = 0x4, scoped, tag = 'scoped memory for tpu_custom_call.1']
    #allocation7 [shape = 'u8[6144]{0}', space=vmem, size = 0x1800, scoped, tag = 'input window, operand 3, single buffered']
    #allocation8 [shape = 'u8[6144]{0}', space=vmem, size = 0x1800, scoped, tag = 'input window, operand 4, single buffered']
    #allocation9 [shape = 's32[1]{0}', space=sflag, size = 0x4, scoped, tag = 'scoped memory for tpu_custom_call.1']
    #allocation10 [shape = 'u8[8192]{0}', space=vmem, size = 0x2000, scoped, tag = 'output window, operand 0']
    %14 = vsyncpa [#allocation3], 0
    %15 = vsyncpa [#allocation6], 0
    %16 = vsyncpa [#allocation9], 0
    %17 = vsyncpa [#allocation4], 0
    %s18 = scalar_lea.sflag [#allocation4], 1
    %19 = vsyncpa %s18, 0
    loop: start=0, step=1, limit=4
    $region2: #{tpu_custom_call.1} parent=1 // loop_pre_header
      _
    $region3: #{tpu_custom_call.1} parent=1 // loop_header
      %s21 = sphi 0, %s25
      %p22 = scmp.ge.s32.totalorder %s21, 4
      %s31 = sphi 0, %s33
      %s34 = sphi 0, %s31
      %s35 = sphi 0, %s34
      %s51 = sphi 0, %s35
      %s55 = sphi 0, %s55
      %s57 = sphi 0, %s55
      %s58 = sphi 0, %s57
      %s72 = sphi 0, %s58
      %s76 = sphi 0, %s76
      %s78 = sphi 0, %s76
      %s79 = sphi 0, %s78
      %s93 = sphi 0, %s79
      %s97 = sphi 0, %s97
      %s99 = sphi 0, %s97
      %s100 = sphi 0, %s99
      %s114 = sphi 0, %s100
      %s118 = sphi 0, %s118
      %s120 = sphi 0, %s118
      %s121 = sphi 0, %s120
      %s135 = sphi 0, %s121
      %s139 = sphi 0, %s139
      %s141 = sphi 0, %s139
      %s142 = sphi 0, %s141
      %s156 = sphi 0, %s142
      %s160 = sphi 0, %s160
      %s162 = sphi 0, %s160
      %s163 = sphi 0, %s162
      %s177 = sphi 0, %s163
      %s181 = sphi 0, %s181
      %s183 = sphi 0, %s181
      %s184 = sphi 0, %s183
      %s198 = sphi 0, %s184
      %s202 = sphi 0, %s202
      %s204 = sphi 0, %s202
      %s205 = sphi 0, %s204
      %s219 = sphi 0, %s205
      %s225 = sphi 0, %s227
      %s228 = sphi 0, %s225
      %s229 = sphi 0, %s228
      %s245 = sphi 0, %s229
    $region4: #{tpu_custom_call.1} parent=1 // loop_header_branch
      %24 = sbr.rel (%p22) target = $region8
    $region5: #{tpu_custom_call.1} parent=1 // loop_body
      %s26 = ssub.s32 %s21, 1
      %s27 = ssub.s32 %s21, 2
      %s28 = sadd.s32 %s21, 1
      %s29 = ssub.s32 %s21, %s28
      %p30 = scmp.eq.s32.totalorder %s29, 0
      %s32 = sadd.s32 %s31, 1
      %s33 = scalar_select %p30, %s31, %s32
      %p36 = pneg %p30
      %p37 = scmp.eq.s32.totalorder %s21, 1
      %p38 = por %p36, %p37
      %p39 = scmp.ne.s32.totalorder %s31, %s34
      %p40 = scmp.eq.s32.totalorder %s21, 0
      %p41 = por %p39, %p40
      %p42 = scmp.ne.s32.totalorder %s31, %s34
      %p43 = scmp.eq.s32.totalorder %s26, 1
      %p44 = por %p42, %p43
      %p45 = scmp.ne.s32.totalorder %s34, %s35
      %p46 = scmp.eq.s32.totalorder %s26, 0
      %p47 = por %p45, %p46
      %p48 = scmp.ne.s32.totalorder %s34, %s35
      %p49 = scmp.eq.s32.totalorder %s27, 1
      %p50 = por %p48, %p49
      %p52 = scmp.ne.s32.totalorder %s35, %s51
      %p53 = scmp.eq.s32.totalorder %s27, 0
      %p54 = por %p52, %p53
      %s56 = sadd.s32 %s55, 1
      %p59 = scmp.eq.s32.totalorder %s21, 1
      %p60 = scmp.ne.s32.totalorder %s55, %s57
      %p61 = scmp.eq.s32.totalorder %s21, 0
      %p62 = por %p60, %p61
      %p63 = scmp.ne.s32.totalorder %s55, %s57
      %p64 = scmp.eq.s32.totalorder %s26, 1
      %p65 = por %p63, %p64
      %p66 = scmp.ne.s32.totalorder %s57, %s58
      %p67 = scmp.eq.s32.totalorder %s26, 0
      %p68 = por %p66, %p67
      %p69 = scmp.ne.s32.totalorder %s57, %s58
      %p70 = scmp.eq.s32.totalorder %s27, 1
      %p71 = por %p69, %p70
      %p73 = scmp.ne.s32.totalorder %s58, %s72
      %p74 = scmp.eq.s32.totalorder %s27, 0
      %p75 = por %p73, %p74
      %s77 = sadd.s32 %s76, 1
      %p80 = scmp.eq.s32.totalorder %s21, 1
      %p81 = scmp.ne.s32.totalorder %s76, %s78
      %p82 = scmp.eq.s32.totalorder %s21, 0
      %p83 = por %p81, %p82
      %p84 = scmp.ne.s32.totalorder %s76, %s78
      %p85 = scmp.eq.s32.totalorder %s26, 1
      %p86 = por %p84, %p85
      %p87 = scmp.ne.s32.totalorder %s78, %s79
      %p88 = scmp.eq.s32.totalorder %s26, 0
      %p89 = por %p87, %p88
      %p90 = scmp.ne.s32.totalorder %s78, %s79
      %p91 = scmp.eq.s32.totalorder %s27, 1
      %p92 = por %p90, %p91
      %p94 = scmp.ne.s32.totalorder %s79, %s93
      %p95 = scmp.eq.s32.totalorder %s27, 0
      %p96 = por %p94, %p95
      %s98 = sadd.s32 %s97, 1
      %p101 = scmp.eq.s32.totalorder %s21, 1
      %p102 = scmp.ne.s32.totalorder %s97, %s99
      %p103 = scmp.eq.s32.totalorder %s21, 0
      %p104 = por %p102, %p103
      %p105 = scmp.ne.s32.totalorder %s97, %s99
      %p106 = scmp.eq.s32.totalorder %s26, 1
      %p107 = por %p105, %p106
      %p108 = scmp.ne.s32.totalorder %s99, %s100
      %p109 = scmp.eq.s32.totalorder %s26, 0
      %p110 = por %p108, %p109
      %p111 = scmp.ne.s32.totalorder %s99, %s100
      %p112 = scmp.eq.s32.totalorder %s27, 1
      %p113 = por %p111, %p112
      %p115 = scmp.ne.s32.totalorder %s100, %s114
      %p116 = scmp.eq.s32.totalorder %s27, 0
      %p117 = por %p115, %p116
      %s119 = sadd.s32 %s118, 1
      %p122 = scmp.eq.s32.totalorder %s21, 1
      %p123 = scmp.ne.s32.totalorder %s118, %s120
      %p124 = scmp.eq.s32.totalorder %s21, 0
      %p125 = por %p123, %p124
      %p126 = scmp.ne.s32.totalorder %s118, %s120
      %p127 = scmp.eq.s32.totalorder %s26, 1
      %p128 = por %p126, %p127
      %p129 = scmp.ne.s32.totalorder %s120, %s121
      %p130 = scmp.eq.s32.totalorder %s26, 0
      %p131 = por %p129, %p130
      %p132 = scmp.ne.s32.totalorder %s120, %s121
      %p133 = scmp.eq.s32.totalorder %s27, 1
      %p134 = por %p132, %p133
      %p136 = scmp.ne.s32.totalorder %s121, %s135
      %p137 = scmp.eq.s32.totalorder %s27, 0
      %p138 = por %p136, %p137
      %s140 = sadd.s32 %s139, 1
      %p143 = scmp.eq.s32.totalorder %s21, 1
      %p144 = scmp.ne.s32.totalorder %s139, %s141
      %p145 = scmp.eq.s32.totalorder %s21, 0
      %p146 = por %p144, %p145
      %p147 = scmp.ne.s32.totalorder %s139, %s141
      %p148 = scmp.eq.s32.totalorder %s26, 1
      %p149 = por %p147, %p148
      %p150 = scmp.ne.s32.totalorder %s141, %s142
      %p151 = scmp.eq.s32.totalorder %s26, 0
      %p152 = por %p150, %p151
      %p153 = scmp.ne.s32.totalorder %s141, %s142
      %p154 = scmp.eq.s32.totalorder %s27, 1
      %p155 = por %p153, %p154
      %p157 = scmp.ne.s32.totalorder %s142, %s156
      %p158 = scmp.eq.s32.totalorder %s27, 0
      %p159 = por %p157, %p158
      %s161 = sadd.s32 %s160, 1
      %p164 = scmp.eq.s32.totalorder %s21, 1
      %p165 = scmp.ne.s32.totalorder %s160, %s162
      %p166 = scmp.eq.s32.totalorder %s21, 0
      %p167 = por %p165, %p166
      %p168 = scmp.ne.s32.totalorder %s160, %s162
      %p169 = scmp.eq.s32.totalorder %s26, 1
      %p170 = por %p168, %p169
      %p171 = scmp.ne.s32.totalorder %s162, %s163
      %p172 = scmp.eq.s32.totalorder %s26, 0
      %p173 = por %p171, %p172
      %p174 = scmp.ne.s32.totalorder %s162, %s163
      %p175 = scmp.eq.s32.totalorder %s27, 1
      %p176 = por %p174, %p175
      %p178 = scmp.ne.s32.totalorder %s163, %s177
      %p179 = scmp.eq.s32.totalorder %s27, 0
      %p180 = por %p178, %p179
      %s182 = sadd.s32 %s181, 1
      %p185 = scmp.eq.s32.totalorder %s21, 1
      %p186 = scmp.ne.s32.totalorder %s181, %s183
      %p187 = scmp.eq.s32.totalorder %s21, 0
      %p188 = por %p186, %p187
      %p189 = scmp.ne.s32.totalorder %s181, %s183
      %p190 = scmp.eq.s32.totalorder %s26, 1
      %p191 = por %p189, %p190
      %p192 = scmp.ne.s32.totalorder %s183, %s184
      %p193 = scmp.eq.s32.totalorder %s26, 0
      %p194 = por %p192, %p193
      %p195 = scmp.ne.s32.totalorder %s183, %s184
      %p196 = scmp.eq.s32.totalorder %s27, 1
      %p197 = por %p195, %p196
      %p199 = scmp.ne.s32.totalorder %s184, %s198
      %p200 = scmp.eq.s32.totalorder %s27, 0
      %p201 = por %p199, %p200
      %s203 = sadd.s32 %s202, 1
      %p206 = scmp.eq.s32.totalorder %s21, 1
      %p207 = scmp.ne.s32.totalorder %s202, %s204
      %p208 = scmp.eq.s32.totalorder %s21, 0
      %p209 = por %p207, %p208
      %p210 = scmp.ne.s32.totalorder %s202, %s204
      %p211 = scmp.eq.s32.totalorder %s26, 1
      %p212 = por %p210, %p211
      %p213 = scmp.ne.s32.totalorder %s204, %s205
      %p214 = scmp.eq.s32.totalorder %s26, 0
      %p215 = por %p213, %p214
      %p216 = scmp.ne.s32.totalorder %s204, %s205
      %p217 = scmp.eq.s32.totalorder %s27, 1
      %p218 = por %p216, %p217
      %p220 = scmp.ne.s32.totalorder %s205, %s219
      %p221 = scmp.eq.s32.totalorder %s27, 0
      %p222 = por %p220, %p221
      %s223 = ssub.s32 %s21, %s28
      %p224 = scmp.eq.s32.totalorder %s223, 0
      %s226 = sadd.s32 %s225, 1
      %s227 = scalar_select %p224, %s225, %s226
      %p230 = pneg %p224
      %p231 = scmp.eq.s32.totalorder %s21, 1
      %p232 = por %p230, %p231
      %p233 = scmp.ne.s32.totalorder %s225, %s228
      %p234 = scmp.eq.s32.totalorder %s21, 0
      %p235 = por %p233, %p234
      %p236 = scmp.ne.s32.totalorder %s225, %s228
      %p237 = scmp.eq.s32.totalorder %s26, 1
      %p238 = por %p236, %p237
      %p239 = scmp.ne.s32.totalorder %s228, %s229
      %p240 = scmp.eq.s32.totalorder %s26, 0
      %p241 = por %p239, %p240
      %p242 = scmp.ne.s32.totalorder %s228, %s229
      %p243 = scmp.eq.s32.totalorder %s27, 1
      %p244 = por %p242, %p243
      %p246 = scmp.ne.s32.totalorder %s229, %s245
      %p247 = scmp.eq.s32.totalorder %s27, 0
      %p248 = por %p246, %p247
      %p249 = scmp.le.s32.totalorder 1, %s21
      %p250 = scmp.lt.s32.totalorder %s21, 3
      %p251 = pnand %p249, %p250
      %p252 = pneg %p251
      // Predicated region
      $region9: #{tpu_custom_call.1} parent=5 // pred_check
        _
      $region10: #{tpu_custom_call.1} parent=5 // pred_check_branch
        %254 = sbr.rel (%p251) target = $region12
      $region11: #{tpu_custom_call.1} parent=5 // pred_region
        %s255 = ssub.s32 %s21, 1
        // Predicated region
        $region13: #{tpu_custom_call.1} parent=11 // pred_check
          %p256 = pneg %p68
        $region14: #{tpu_custom_call.1} parent=11 // pred_check_branch
          %258 = sbr.rel (%p256) target = $region16
        $region15: #{tpu_custom_call.1} parent=11 // pred_region
          %s260 = ssub.s32 192, 192
          %261 = vsyncadd [#allocation3], %s260
          %s262 = sshll.u32 [#allocation2], 4
          %s263 = int_to_ptr.vmem [resolvable:$true] %s262
          %268 = dma.hbm_to_vmem [thread:$0]  %s1, 192, %s263, [#allocation3], 64, 64, 4
        $region16: #{tpu_custom_call.1} parent=11 // pred_fallthru
          _
        // Predicated region
        $region17: #{tpu_custom_call.1} parent=11 // pred_check
          %p269 = pneg %p89
        $region18: #{tpu_custom_call.1} parent=11 // pred_check_branch
          %271 = sbr.rel (%p269) target = $region20
        $region19: #{tpu_custom_call.1} parent=11 // pred_region
          %s273 = ssub.s32 192, 192
          %274 = vsyncadd [#allocation6], %s273
          %s275 = sshll.u32 [#allocation5], 4
          %s276 = int_to_ptr.vmem [resolvable:$true] %s275
          %281 = dma.hbm_to_vmem [thread:$0]  %s2, 192, %s276, [#allocation6], 64, 64, 4
        $region20: #{tpu_custom_call.1} parent=11 // pred_fallthru
          _
        // Predicated region
        $region21: #{tpu_custom_call.1} parent=11 // pred_check
          %p282 = pneg %p110
        $region22: #{tpu_custom_call.1} parent=11 // pred_check_branch
          %284 = sbr.rel (%p282) target = $region24
        $region23: #{tpu_custom_call.1} parent=11 // pred_region
          %s286 = ssub.s32 192, 192
          %287 = vsyncadd [#allocation6], %s286
          %s288 = sshll.u32 [#allocation7], 4
          %s289 = int_to_ptr.vmem [resolvable:$true] %s288
          %294 = dma.hbm_to_vmem [thread:$0]  %s3, 192, %s289, [#allocation6], 64, 64, 4
        $region24: #{tpu_custom_call.1} parent=11 // pred_fallthru
          _
        // Predicated region
        $region25: #{tpu_custom_call.1} parent=11 // pred_check
          %p295 = pneg %p131
        $region26: #{tpu_custom_call.1} parent=11 // pred_check_branch
          %297 = sbr.rel (%p295) target = $region28
        $region27: #{tpu_custom_call.1} parent=11 // pred_region
          %s299 = ssub.s32 192, 192
          %300 = vsyncadd [#allocation9], %s299
          %s301 = sshll.u32 [#allocation8], 4
          %s302 = int_to_ptr.vmem [resolvable:$true] %s301
          %307 = dma.hbm_to_vmem [thread:$0]  %s4, 192, %s302, [#allocation9], 64, 64, 4
        $region28: #{tpu_custom_call.1} parent=11 // pred_fallthru
          _
        // Predicated region
        $region29: #{tpu_custom_call.1} parent=11 // pred_check
          %p308 = pneg %p152
        $region30: #{tpu_custom_call.1} parent=11 // pred_check_branch
          %310 = sbr.rel (%p308) target = $region32
        $region31: #{tpu_custom_call.1} parent=11 // pred_region
          _
        $region32: #{tpu_custom_call.1} parent=11 // pred_fallthru
          _
        // Predicated region
        $region33: #{tpu_custom_call.1} parent=11 // pred_check
          %p311 = pneg %p173
        $region34: #{tpu_custom_call.1} parent=11 // pred_check_branch
          %313 = sbr.rel (%p311) target = $region36
        $region35: #{tpu_custom_call.1} parent=11 // pred_region
          _
        $region36: #{tpu_custom_call.1} parent=11 // pred_fallthru
          _
        // Predicated region
        $region37: #{tpu_custom_call.1} parent=11 // pred_check
          %p314 = pneg %p194
        $region38: #{tpu_custom_call.1} parent=11 // pred_check_branch
          %316 = sbr.rel (%p314) target = $region40
        $region39: #{tpu_custom_call.1} parent=11 // pred_region
          _
        $region40: #{tpu_custom_call.1} parent=11 // pred_fallthru
          _
        // Predicated region
        $region41: #{tpu_custom_call.1} parent=11 // pred_check
          %p317 = pneg %p215
        $region42: #{tpu_custom_call.1} parent=11 // pred_check_branch
          %319 = sbr.rel (%p317) target = $region44
        $region43: #{tpu_custom_call.1} parent=11 // pred_region
          _
        $region44: #{tpu_custom_call.1} parent=11 // pred_fallthru
          _
      $region12: #{tpu_custom_call.1} parent=5 // pred_fallthru
        _
      %p320 = scmp.lt.s32.totalorder %s21, 2
      // Predicated region
      $region45: #{tpu_custom_call.1} parent=5 // pred_check
        %p321 = pneg %p320
      $region46: #{tpu_custom_call.1} parent=5 // pred_check_branch
        %323 = sbr.rel (%p321) target = $region48
      $region47: #{tpu_custom_call.1} parent=5 // pred_region
        // Predicated region
        $region49: #{tpu_custom_call.1} parent=47 // pred_check
          %p324 = pneg %p41
        $region50: #{tpu_custom_call.1} parent=47 // pred_check_branch
          %326 = sbr.rel (%p324) target = $region52
        $region51: #{tpu_custom_call.1} parent=47 // pred_region
          %s327 = smul.u32 2, %s21
          %p328 = scmp.lt.s32.totalorder %s327, 3
          %s329 = scalar_select %p328, %s327, 3
          %s330 = smul.addr %s329, 4
          %s331 = scalar_lea.vmem %s0, %s330
          %s332 = smul.u32 2, %s21
        $region52: #{tpu_custom_call.1} parent=47 // pred_fallthru
          _
      $region48: #{tpu_custom_call.1} parent=5 // pred_fallthru
        _
      %p333 = scmp.le.s32.totalorder 1, %s21
      %p334 = scmp.lt.s32.totalorder %s21, 3
      %p335 = pnand %p333, %p334
      %p336 = pneg %p335
      // Predicated region
      $region53: #{tpu_custom_call.1} parent=5 // pred_check
        _
      $region54: #{tpu_custom_call.1} parent=5 // pred_check_branch
        %338 = sbr.rel (%p335) target = $region56
      $region55: #{tpu_custom_call.1} parent=5 // pred_region
        %s339 = ssub.s32 %s21, 1
        // Predicated region
        $region57: #{tpu_custom_call.1} parent=55 // pred_check
          %p340 = pneg %p68
        $region58: #{tpu_custom_call.1} parent=55 // pred_check_branch
          %342 = sbr.rel (%p340) target = $region60
        $region59: #{tpu_custom_call.1} parent=55 // pred_region
          %343 = dma.done [#allocation3], 192
        $region60: #{tpu_custom_call.1} parent=55 // pred_fallthru
          _
        // Predicated region
        $region61: #{tpu_custom_call.1} parent=55 // pred_check
          %p344 = pneg %p89
        $region62: #{tpu_custom_call.1} parent=55 // pred_check_branch
          %346 = sbr.rel (%p344) target = $region64
        $region63: #{tpu_custom_call.1} parent=55 // pred_region
          %347 = dma.done [#allocation6], 192
        $region64: #{tpu_custom_call.1} parent=55 // pred_fallthru
          _
        // Predicated region
        $region65: #{tpu_custom_call.1} parent=55 // pred_check
          %p348 = pneg %p110
        $region66: #{tpu_custom_call.1} parent=55 // pred_check_branch
          %350 = sbr.rel (%p348) target = $region68
        $region67: #{tpu_custom_call.1} parent=55 // pred_region
          %351 = dma.done [#allocation6], 192
        $region68: #{tpu_custom_call.1} parent=55 // pred_fallthru
          _
        // Predicated region
        $region69: #{tpu_custom_call.1} parent=55 // pred_check
          %p352 = pneg %p131
        $region70: #{tpu_custom_call.1} parent=55 // pred_check_branch
          %354 = sbr.rel (%p352) target = $region72
        $region71: #{tpu_custom_call.1} parent=55 // pred_region
          %355 = dma.done [#allocation9], 192
        $region72: #{tpu_custom_call.1} parent=55 // pred_fallthru
          _
        %s356 = smul.u32 2, %s26
        %p357 = scmp.lt.s32.totalorder %s356, 3
        %s358 = scalar_select %p357, %s356, 3
        %s359 = smul.addr %s358, 4
        %s360 = scalar_lea.vmem %s0, %s359
        %p361 = pneg %p47
        %p362 = pneg %p44
        %p363 = pneg %p68
        %p364 = pneg %p65
        %p365 = pneg %p89
        %p366 = pneg %p86
        %p367 = pneg %p110
        %p368 = pneg %p107
        %p369 = pneg %p131
        %p370 = pneg %p128
        %p371 = pneg %p152
        %p372 = pneg %p149
        %p373 = pneg %p173
        %p374 = pneg %p170
        %p375 = pneg %p194
        %p376 = pneg %p191
        %p377 = pneg %p215
        %p378 = pneg %p212
        %p379 = pneg %p241
        %p380 = pneg %p238
        %s381 = sand.u32 %s228, 1
        %s382 = scalar_lea.sflag [#allocation4], %s381
        %s383 = sand.u32 %s228, 1
        %s384 = smul.addr %s383, 8
        %s385 = scalar_lea.vmem [#allocation10], %s384
        %s386 = smul.u32 2, %s26
        %p387 = scmp.lt.s32.totalorder %s386, 3
        %s388 = scalar_select %p387, %s386, 3
        %s389 = smul.addr %s388, 4
        %s390 = scalar_lea.vmem %s0, %s389
        %s391 = smul.u32 2, %s26
        %s392 = smul.u32 2, %s26
        %v393 = vlaneseq
        %v394 = vand.u32 %v393, 127
        %v395 = vadd.s32 %v394, 128
        %vm396 = vcmp.lt.s32.totalorder %v394, 0
        %v397 = vsub.s32 0, %v394
        %v398 = vsel %vm396, %v397, %v394
        %v399 = vshrl.u32 %v398, 8
        %v400 = vand.u32 %v398, 255
        %v401 = vsub.s32 0, %v400
        %v402 = vsel %vm396, %v401, %v400
        %vm403 = vcmp.lt.s32.totalorder %v395, 0
        %v404 = vsub.s32 0, %v395
        %v405 = vsel %vm403, %v404, %v395
        %v406 = vshrl.u32 %v405, 8
        %v407 = vand.u32 %v405, 255
        %v408 = vsub.s32 0, %v407
        %v409 = vsel %vm403, %v408, %v407
        %vm410 = vcmp.ne.s32.totalorder %v402, 0
        %vm411 = vcmp.ne.s32.totalorder %v409, 0
        %vm412 = vcmp.lt.s32.totalorder %v402, 0
        %vm413 = vcmp.lt.s32.totalorder %v409, 0
        %vm414 = vmand %vm412, %vm410
        %vm415 = vmand %vm413, %vm411
        %v416 = vadd.s32 %v402, 256
        %v417 = vadd.s32 %v409, 256
        %v418 = vsel %vm414, %v416, %v402
        %v419 = vsel %vm415, %v417, %v409
        %vm420 = vcmp.lt.s32.totalorder %v418, 0
        %v421 = vsub.s32 0, %v418
        %v422 = vsel %vm420, %v421, %v418
        %v423 = vshrl.u32 %v422, 4
        %v424 = vand.u32 %v422, 15
        %v425 = vsub.s32 0, %v424
        %v426 = vsel %vm420, %v425, %v424
        %vm427 = vcmp.lt.s32.totalorder %v419, 0
        %v428 = vsub.s32 0, %v419
        %v429 = vsel %vm427, %v428, %v419
        %v430 = vshrl.u32 %v429, 4
        %v431 = vand.u32 %v429, 15
        %v432 = vsub.s32 0, %v431
        %v433 = vsel %vm427, %v432, %v431
        %vm434 = vcmp.ne.s32.totalorder %v426, 0
        %vm435 = vcmp.ne.s32.totalorder %v433, 0
        %vm436 = vcmp.lt.s32.totalorder %v426, 0
        %vm437 = vcmp.lt.s32.totalorder %v433, 0
        %vm438 = vmand %vm436, %vm434
        %vm439 = vmand %vm437, %vm435
        %v440 = vadd.s32 %v426, 16
        %v441 = vadd.s32 %v433, 16
        %v442 = vsel %vm438, %v440, %v426
        %v443 = vsel %vm439, %v441, %v433
        %vm444 = vcmp.ne.s32.totalorder %v442, 0
        %vm445 = vcmp.ne.s32.totalorder %v443, 0
        %vm446 = vcmp.ne.s32.totalorder %v442, 15
        %vm447 = vcmp.ne.s32.totalorder %v443, 15
        %vm448 = vcmp.ge.s32.totalorder %v418, 16
        %vm449 = vcmp.ge.s32.totalorder %v419, 16
        %vm450 = vcmp.lt.s32.totalorder %v418, 240
        %vm451 = vcmp.lt.s32.totalorder %v419, 240
        %v452 = vld [vmem:[%s390] sm:$0xff]
        %v454 = vcombine.high %v452, %v452
        %456 = vrot.lane.b32.xlu0 %v452, 16
        %v457 = vpop.permute.xlu0 %456
        %458 = vrot.lane.b32.xlu0 %v454, 16
        %v459 = vpop.permute.xlu0 %458
        %vm460 = vcmp.lt.s32.totalorder %v394, 16
        %v461 = vsel %vm460, %v457, %v459
        %v462 = vsel %vm460, %v459, %v457
        %v463 = vsel %vm448, 1, 0
        %v464 = vsel %vm449, 1, 0
        %vm465 = vcmp.eq.s32.totalorder %v463, 1
        %vm466 = vcmp.eq.s32.totalorder %v464, 1
        %v467 = vsel %vm465, %v462, 0.0
        %v468 = vsel %vm466, %v461, 0.0
        %469 = vrot.lane.b32.xlu0 %v452, 112
        %v470 = vpop.permute.xlu0 %469
        %471 = vrot.lane.b32.xlu0 %v454, 112
        %v472 = vpop.permute.xlu0 %471
        %vm473 = vcmp.lt.s32.totalorder %v394, 112
        %v474 = vsel %vm473, %v470, %v472
        %v475 = vsel %vm473, %v472, %v470
        %v476 = vsel %vm450, 1, 0
        %v477 = vsel %vm451, 1, 0
        %vm478 = vcmp.eq.s32.totalorder %v476, 1
        %vm479 = vcmp.eq.s32.totalorder %v477, 1
        %v480 = vsel %vm478, %v474, 0.0
        %v481 = vsel %vm479, %v475, 0.0
        %v482 = vld [vmem:[#allocation2] sm:$0xf]
        %s483 = scalar_lea.vmem [#allocation2], 4
        %v484 = vld [vmem:[%s483] sm:$0xf]
        %vm485 = vcmask 31744
        %v487 = vsel %vm485, %v484, 0
        %vm489 = vcmask 1043456
        %v490 = vsel %vm489, %v452, 0
        %v492 = vsel %vm489, %v454, 0
        %494 = vmatprep.subr.mxu0 0.0
        %495 = vmatpush1.msra.mxu0 0.0
        %496 = vmatprep.subr.mxu0 0.0
        %497 = vmatpush1.msra.mxu0 0.0
        %498 = vmatprep.subr.mxu0 0.0
        %499 = vmatpush1.msra.mxu0 0.0
        %500 = vmatprep.subr.mxu0 0.0
        %501 = vmatpush1.msra.mxu0 0.0
        %502 = vmatprep.subr.mxu0 0.0
        %503 = vmatpush1.msra.mxu0 0.0
        %504 = vmatprep.subr.mxu0 0.0
        %505 = vmatpush1.msra.mxu0 0.0
        %506 = vmatprep.subr.mxu0 0.0
        %507 = vmatpush1.msra.mxu0 0.0
        %508 = vmatprep.subr.mxu0 0.0
        %509 = vmatpush1.msra.mxu0 0.0
        %510 = vmatprep.subr.mxu0 0.0
        %511 = vmatpush1.msra.mxu0 0.0
        %512 = vmatprep.subr.mxu0 0.0
        %513 = vmatpush1.msra.mxu0 0.0
        %514 = vmatprep.subr.mxu0 0.0
        %515 = vmatpush1.msra.mxu0 0.0
        %516 = vmatprep.subr.mxu0 0.0
        %517 = vmatpush1.msra.mxu0 0.0
        %518 = vmatprep.subr.mxu0 0.0
        %519 = vmatpush1.msra.mxu0 0.0
        %520 = vmatprep.subr.mxu0 0.0
        %521 = vmatpush1.msra.mxu0 0.0
        %522 = vmatprep.subr.mxu0 0.0
        %523 = vmatpush1.msra.mxu0 0.0
        %524 = vmatprep.subr.mxu0 %v492
        %525 = vmatpush1.msra.mxu0 %v490
        %526 = vmatprep.subr.mxu0 0.0
        %527 = vmatpush2.msra.mxu0 0.0
        %528 = vmatprep.subr.mxu0 0.0
        %529 = vmatpush2.msra.mxu0 0.0
        %530 = vmatprep.subr.mxu0 0.0
        %531 = vmatpush2.msra.mxu0 0.0
        %532 = vmatprep.subr.mxu0 0.0
        %533 = vmatpush2.msra.mxu0 0.0
        %534 = vmatprep.subr.mxu0 0.0
        %535 = vmatpush2.msra.mxu0 0.0
        %536 = vmatprep.subr.mxu0 0.0
        %537 = vmatpush2.msra.mxu0 0.0
        %538 = vmatprep.subr.mxu0 0.0
        %539 = vmatpush2.msra.mxu0 0.0
        %540 = vmatprep.subr.mxu0 0.0
        %541 = vmatpush2.msra.mxu0 0.0
        %542 = vmatprep.subr.mxu0 0.0
        %543 = vmatpush2.msra.mxu0 0.0
        %544 = vmatprep.subr.mxu0 0.0
        %545 = vmatpush2.msra.mxu0 0.0
        %546 = vmatprep.subr.mxu0 0.0
        %547 = vmatpush2.msra.mxu0 0.0
        %548 = vmatprep.subr.mxu0 0.0
        %549 = vmatpush2.msra.mxu0 0.0
        %550 = vmatprep.subr.mxu0 0.0
        %551 = vmatpush2.msra.mxu0 0.0
        %552 = vmatprep.subr.mxu0 0.0
        %553 = vmatpush2.msra.mxu0 0.0
        %554 = vmatprep.subr.mxu0 0.0
        %555 = vmatpush2.msra.mxu0 0.0
        %556 = vmatprep.subr.mxu0 0.0
        %557 = vmatpush2.msra.mxu0 0.0
        %558 = vmatprep.mubr.f32.mxu0 0.0
        %559 = vmatmul.mubr.f32.gmra.mxu0 %v487
        %v560 = vpop.f32.mrf.mxu0
        %v561 = vadd.f32 0.0, %v560
        %v562 = vpop.f32.mrf.mxu0
        %v563 = vadd.f32 0.0, %v562
        %564 = vdwg.mxu0
        %v566 = vsel %vm485, %v482, 0
        %v569 = vsel %vm489, %v467, 0
        %v572 = vsel %vm489, %v468, 0
        %574 = vmatprep.subr.mxu0 0.0
        %575 = vmatpush1.msra.mxu0 0.0
        %576 = vmatprep.subr.mxu0 0.0
        %577 = vmatpush1.msra.mxu0 0.0
        %578 = vmatprep.subr.mxu0 0.0
        %579 = vmatpush1.msra.mxu0 0.0
        %580 = vmatprep.subr.mxu0 0.0
        %581 = vmatpush1.msra.mxu0 0.0
        %582 = vmatprep.subr.mxu0 0.0
        %583 = vmatpush1.msra.mxu0 0.0
        %584 = vmatprep.subr.mxu0 0.0
        %585 = vmatpush1.msra.mxu0 0.0
        %586 = vmatprep.subr.mxu0 0.0
        %587 = vmatpush1.msra.mxu0 0.0
        %588 = vmatprep.subr.mxu0 0.0
        %589 = vmatpush1.msra.mxu0 0.0
        %590 = vmatprep.subr.mxu0 0.0
        %591 = vmatpush1.msra.mxu0 0.0
        %592 = vmatprep.subr.mxu0 0.0
        %593 = vmatpush1.msra.mxu0 0.0
        %594 = vmatprep.subr.mxu0 0.0
        %595 = vmatpush1.msra.mxu0 0.0
        %596 = vmatprep.subr.mxu0 0.0
        %597 = vmatpush1.msra.mxu0 0.0
        %598 = vmatprep.subr.mxu0 0.0
        %599 = vmatpush1.msra.mxu0 0.0
        %600 = vmatprep.subr.mxu0 0.0
        %601 = vmatpush1.msra.mxu0 0.0
        %602 = vmatprep.subr.mxu0 0.0
        %603 = vmatpush1.msra.mxu0 0.0
        %604 = vmatprep.subr.mxu0 %v572
        %605 = vmatpush1.msra.mxu0 %v569
        %606 = vmatprep.subr.mxu0 0.0
        %607 = vmatpush2.msra.mxu0 0.0
        %608 = vmatprep.subr.mxu0 0.0
        %609 = vmatpush2.msra.mxu0 0.0
        %610 = vmatprep.subr.mxu0 0.0
        %611 = vmatpush2.msra.mxu0 0.0
        %612 = vmatprep.subr.mxu0 0.0
        %613 = vmatpush2.msra.mxu0 0.0
        %614 = vmatprep.subr.mxu0 0.0
        %615 = vmatpush2.msra.mxu0 0.0
        %616 = vmatprep.subr.mxu0 0.0
        %617 = vmatpush2.msra.mxu0 0.0
        %618 = vmatprep.subr.mxu0 0.0
        %619 = vmatpush2.msra.mxu0 0.0
        %620 = vmatprep.subr.mxu0 0.0
        %621 = vmatpush2.msra.mxu0 0.0
        %622 = vmatprep.subr.mxu0 0.0
        %623 = vmatpush2.msra.mxu0 0.0
        %624 = vmatprep.subr.mxu0 0.0
        %625 = vmatpush2.msra.mxu0 0.0
        %626 = vmatprep.subr.mxu0 0.0
        %627 = vmatpush2.msra.mxu0 0.0
        %628 = vmatprep.subr.mxu0 0.0
        %629 = vmatpush2.msra.mxu0 0.0
        %630 = vmatprep.subr.mxu0 0.0
        %631 = vmatpush2.msra.mxu0 0.0
        %632 = vmatprep.subr.mxu0 0.0
        %633 = vmatpush2.msra.mxu0 0.0
        %634 = vmatprep.subr.mxu0 0.0
        %635 = vmatpush2.msra.mxu0 0.0
        %636 = vmatprep.subr.mxu0 0.0
        %637 = vmatpush2.msra.mxu0 0.0
        %638 = vmatprep.mubr.f32.mxu0 0.0
        %639 = vmatmul.mubr.f32.gmra.mxu0 %v566
        %v640 = vpop.f32.mrf.mxu0
        %v641 = vadd.f32 %v561, %v640
        %v642 = vpop.f32.mrf.mxu0
        %v643 = vadd.f32 %v563, %v642
        %644 = vdwg.mxu0
        %s645 = scalar_lea.vmem [#allocation2], 8
        %v646 = vld [vmem:[%s645] sm:$0xf]
        %v648 = vsel %vm485, %v646, 0
        %v651 = vsel %vm489, %v480, 0
        %v654 = vsel %vm489, %v481, 0
        %656 = vmatprep.subr.mxu0 0.0
        %657 = vmatpush1.msra.mxu0 0.0
        %658 = vmatprep.subr.mxu0 0.0
        %659 = vmatpush1.msra.mxu0 0.0
        %660 = vmatprep.subr.mxu0 0.0
        %661 = vmatpush1.msra.mxu0 0.0
        %662 = vmatprep.subr.mxu0 0.0
        %663 = vmatpush1.msra.mxu0 0.0
        %664 = vmatprep.subr.mxu0 0.0
        %665 = vmatpush1.msra.mxu0 0.0
        %666 = vmatprep.subr.mxu0 0.0
        %667 = vmatpush1.msra.mxu0 0.0
        %668 = vmatprep.subr.mxu0 0.0
        %669 = vmatpush1.msra.mxu0 0.0
        %670 = vmatprep.subr.mxu0 0.0
        %671 = vmatpush1.msra.mxu0 0.0
        %672 = vmatprep.subr.mxu0 0.0
        %673 = vmatpush1.msra.mxu0 0.0
        %674 = vmatprep.subr.mxu0 0.0
        %675 = vmatpush1.msra.mxu0 0.0
        %676 = vmatprep.subr.mxu0 0.0
        %677 = vmatpush1.msra.mxu0 0.0
        %678 = vmatprep.subr.mxu0 0.0
        %679 = vmatpush1.msra.mxu0 0.0
        %680 = vmatprep.subr.mxu0 0.0
        %681 = vmatpush1.msra.mxu0 0.0
        %682 = vmatprep.subr.mxu0 0.0
        %683 = vmatpush1.msra.mxu0 0.0
        %684 = vmatprep.subr.mxu0 0.0
        %685 = vmatpush1.msra.mxu0 0.0
        %686 = vmatprep.subr.mxu0 %v654
        %687 = vmatpush1.msra.mxu0 %v651
        %688 = vmatprep.subr.mxu0 0.0
        %689 = vmatpush2.msra.mxu0 0.0
        %690 = vmatprep.subr.mxu0 0.0
        %691 = vmatpush2.msra.mxu0 0.0
        %692 = vmatprep.subr.mxu0 0.0
        %693 = vmatpush2.msra.mxu0 0.0
        %694 = vmatprep.subr.mxu0 0.0
        %695 = vmatpush2.msra.mxu0 0.0
        %696 = vmatprep.subr.mxu0 0.0
        %697 = vmatpush2.msra.mxu0 0.0
        %698 = vmatprep.subr.mxu0 0.0
        %699 = vmatpush2.msra.mxu0 0.0
        %700 = vmatprep.subr.mxu0 0.0
        %701 = vmatpush2.msra.mxu0 0.0
        %702 = vmatprep.subr.mxu0 0.0
        %703 = vmatpush2.msra.mxu0 0.0
        %704 = vmatprep.subr.mxu0 0.0
        %705 = vmatpush2.msra.mxu0 0.0
        %706 = vmatprep.subr.mxu0 0.0
        %707 = vmatpush2.msra.mxu0 0.0
        %708 = vmatprep.subr.mxu0 0.0
        %709 = vmatpush2.msra.mxu0 0.0
        %710 = vmatprep.subr.mxu0 0.0
        %711 = vmatpush2.msra.mxu0 0.0
        %712 = vmatprep.subr.mxu0 0.0
        %713 = vmatpush2.msra.mxu0 0.0
        %714 = vmatprep.subr.mxu0 0.0
        %715 = vmatpush2.msra.mxu0 0.0
        %716 = vmatprep.subr.mxu0 0.0
        %717 = vmatpush2.msra.mxu0 0.0
        %718 = vmatprep.subr.mxu0 0.0
        %719 = vmatpush2.msra.mxu0 0.0
        %720 = vmatprep.mubr.f32.mxu0 0.0
        %721 = vmatmul.mubr.f32.gmra.mxu0 %v648
        %v722 = vpop.f32.mrf.mxu0
        %v723 = vadd.f32 0.0, %v722
        %v724 = vpop.f32.mrf.mxu0
        %v725 = vadd.f32 0.0, %v724
        %726 = vdwg.mxu0
        %v727 = vadd.f32 %v641, %v723
        %v728 = vadd.f32 %v643, %v725
        %729 = vrot.lane.b32.xlu0 %v727, 1
        %v730 = vpop.permute.xlu0 %729
        %731 = vrot.lane.b32.xlu0 %v728, 1
        %v732 = vpop.permute.xlu0 %731
        %vm733 = vcmp.lt.s32.totalorder %v394, 1
        %v734 = vsel %vm733, %v730, %v732
        %v735 = vsel %vm733, %v732, %v730
        %v736 = vsel %vm444, 1, 0
        %v737 = vsel %vm445, 1, 0
        %vm738 = vcmp.eq.s32.totalorder %v736, 1
        %vm739 = vcmp.eq.s32.totalorder %v737, 1
        %v740 = vsel %vm738, %v735, 0.0
        %v741 = vsel %vm739, %v734, 0.0
        %742 = vrot.lane.b32.xlu0 %v727, 127
        %v743 = vpop.permute.xlu0 %742
        %744 = vrot.lane.b32.xlu0 %v728, 127
        %v745 = vpop.permute.xlu0 %744
        %vm746 = vcmp.lt.s32.totalorder %v394, 127
        %v747 = vsel %vm746, %v743, %v745
        %v748 = vsel %vm746, %v745, %v743
        %v749 = vsel %vm446, 1, 0
        %v750 = vsel %vm447, 1, 0
        %vm751 = vcmp.eq.s32.totalorder %v749, 1
        %vm752 = vcmp.eq.s32.totalorder %v750, 1
        %v753 = vsel %vm751, %v747, 0.0
        %v754 = vsel %vm752, %v748, 0.0
        %v755 = vld [vmem:[#allocation5] sm:$0xf]
        %s756 = scalar_lea.vmem [#allocation5], 4
        %v757 = vld [vmem:[%s756] sm:$0xf]
        %v759 = vsel %vm485, %v757, 0
        %v762 = vsel %vm489, %v727, 0
        %v765 = vsel %vm489, %v728, 0
        %767 = vmatprep.subr.mxu0 0.0
        %768 = vmatpush1.msra.mxu0 0.0
        %769 = vmatprep.subr.mxu0 0.0
        %770 = vmatpush1.msra.mxu0 0.0
        %771 = vmatprep.subr.mxu0 0.0
        %772 = vmatpush1.msra.mxu0 0.0
        %773 = vmatprep.subr.mxu0 0.0
        %774 = vmatpush1.msra.mxu0 0.0
        %775 = vmatprep.subr.mxu0 0.0
        %776 = vmatpush1.msra.mxu0 0.0
        %777 = vmatprep.subr.mxu0 0.0
        %778 = vmatpush1.msra.mxu0 0.0
        %779 = vmatprep.subr.mxu0 0.0
        %780 = vmatpush1.msra.mxu0 0.0
        %781 = vmatprep.subr.mxu0 0.0
        %782 = vmatpush1.msra.mxu0 0.0
        %783 = vmatprep.subr.mxu0 0.0
        %784 = vmatpush1.msra.mxu0 0.0
        %785 = vmatprep.subr.mxu0 0.0
        %786 = vmatpush1.msra.mxu0 0.0
        %787 = vmatprep.subr.mxu0 0.0
        %788 = vmatpush1.msra.mxu0 0.0
        %789 = vmatprep.subr.mxu0 0.0
        %790 = vmatpush1.msra.mxu0 0.0
        %791 = vmatprep.subr.mxu0 0.0
        %792 = vmatpush1.msra.mxu0 0.0
        %793 = vmatprep.subr.mxu0 0.0
        %794 = vmatpush1.msra.mxu0 0.0
        %795 = vmatprep.subr.mxu0 0.0
        %796 = vmatpush1.msra.mxu0 0.0
        %797 = vmatprep.subr.mxu0 %v765
        %798 = vmatpush1.msra.mxu0 %v762
        %799 = vmatprep.subr.mxu0 0.0
        %800 = vmatpush2.msra.mxu0 0.0
        %801 = vmatprep.subr.mxu0 0.0
        %802 = vmatpush2.msra.mxu0 0.0
        %803 = vmatprep.subr.mxu0 0.0
        %804 = vmatpush2.msra.mxu0 0.0
        %805 = vmatprep.subr.mxu0 0.0
        %806 = vmatpush2.msra.mxu0 0.0
        %807 = vmatprep.subr.mxu0 0.0
        %808 = vmatpush2.msra.mxu0 0.0
        %809 = vmatprep.subr.mxu0 0.0
        %810 = vmatpush2.msra.mxu0 0.0
        %811 = vmatprep.subr.mxu0 0.0
        %812 = vmatpush2.msra.mxu0 0.0
        %813 = vmatprep.subr.mxu0 0.0
        %814 = vmatpush2.msra.mxu0 0.0
        %815 = vmatprep.subr.mxu0 0.0
        %816 = vmatpush2.msra.mxu0 0.0
        %817 = vmatprep.subr.mxu0 0.0
        %818 = vmatpush2.msra.mxu0 0.0
        %819 = vmatprep.subr.mxu0 0.0
        %820 = vmatpush2.msra.mxu0 0.0
        %821 = vmatprep.subr.mxu0 0.0
        %822 = vmatpush2.msra.mxu0 0.0
        %823 = vmatprep.subr.mxu0 0.0
        %824 = vmatpush2.msra.mxu0 0.0
        %825 = vmatprep.subr.mxu0 0.0
        %826 = vmatpush2.msra.mxu0 0.0
        %827 = vmatprep.subr.mxu0 0.0
        %828 = vmatpush2.msra.mxu0 0.0
        %829 = vmatprep.subr.mxu0 0.0
        %830 = vmatpush2.msra.mxu0 0.0
        %831 = vmatprep.mubr.f32.mxu0 0.0
        %832 = vmatmul.mubr.f32.gmra.mxu0 %v759
        %v833 = vpop.f32.mrf.mxu0
        %v834 = vadd.f32 0.0, %v833
        %v835 = vpop.f32.mrf.mxu0
        %v836 = vadd.f32 0.0, %v835
        %837 = vdwg.mxu0
        %v839 = vsel %vm485, %v755, 0
        %v842 = vsel %vm489, %v740, 0
        %v845 = vsel %vm489, %v741, 0
        %847 = vmatprep.subr.mxu0 0.0
        %848 = vmatpush1.msra.mxu0 0.0
        %849 = vmatprep.subr.mxu0 0.0
        %850 = vmatpush1.msra.mxu0 0.0
        %851 = vmatprep.subr.mxu0 0.0
        %852 = vmatpush1.msra.mxu0 0.0
        %853 = vmatprep.subr.mxu0 0.0
        %854 = vmatpush1.msra.mxu0 0.0
        %855 = vmatprep.subr.mxu0 0.0
        %856 = vmatpush1.msra.mxu0 0.0
        %857 = vmatprep.subr.mxu0 0.0
        %858 = vmatpush1.msra.mxu0 0.0
        %859 = vmatprep.subr.mxu0 0.0
        %860 = vmatpush1.msra.mxu0 0.0
        %861 = vmatprep.subr.mxu0 0.0
        %862 = vmatpush1.msra.mxu0 0.0
        %863 = vmatprep.subr.mxu0 0.0
        %864 = vmatpush1.msra.mxu0 0.0
        %865 = vmatprep.subr.mxu0 0.0
        %866 = vmatpush1.msra.mxu0 0.0
        %867 = vmatprep.subr.mxu0 0.0
        %868 = vmatpush1.msra.mxu0 0.0
        %869 = vmatprep.subr.mxu0 0.0
        %870 = vmatpush1.msra.mxu0 0.0
        %871 = vmatprep.subr.mxu0 0.0
        %872 = vmatpush1.msra.mxu0 0.0
        %873 = vmatprep.subr.mxu0 0.0
        %874 = vmatpush1.msra.mxu0 0.0
        %875 = vmatprep.subr.mxu0 0.0
        %876 = vmatpush1.msra.mxu0 0.0
        %877 = vmatprep.subr.mxu0 %v845
        %878 = vmatpush1.msra.mxu0 %v842
        %879 = vmatprep.subr.mxu0 0.0
        %880 = vmatpush2.msra.mxu0 0.0
        %881 = vmatprep.subr.mxu0 0.0
        %882 = vmatpush2.msra.mxu0 0.0
        %883 = vmatprep.subr.mxu0 0.0
        %884 = vmatpush2.msra.mxu0 0.0
        %885 = vmatprep.subr.mxu0 0.0
        %886 = vmatpush2.msra.mxu0 0.0
        %887 = vmatprep.subr.mxu0 0.0
        %888 = vmatpush2.msra.mxu0 0.0
        %889 = vmatprep.subr.mxu0 0.0
        %890 = vmatpush2.msra.mxu0 0.0
        %891 = vmatprep.subr.mxu0 0.0
        %892 = vmatpush2.msra.mxu0 0.0
        %893 = vmatprep.subr.mxu0 0.0
        %894 = vmatpush2.msra.mxu0 0.0
        %895 = vmatprep.subr.mxu0 0.0
        %896 = vmatpush2.msra.mxu0 0.0
        %897 = vmatprep.subr.mxu0 0.0
        %898 = vmatpush2.msra.mxu0 0.0
        %899 = vmatprep.subr.mxu0 0.0
        %900 = vmatpush2.msra.mxu0 0.0
        %901 = vmatprep.subr.mxu0 0.0
        %902 = vmatpush2.msra.mxu0 0.0
        %903 = vmatprep.subr.mxu0 0.0
        %904 = vmatpush2.msra.mxu0 0.0
        %905 = vmatprep.subr.mxu0 0.0
        %906 = vmatpush2.msra.mxu0 0.0
        %907 = vmatprep.subr.mxu0 0.0
        %908 = vmatpush2.msra.mxu0 0.0
        %909 = vmatprep.subr.mxu0 0.0
        %910 = vmatpush2.msra.mxu0 0.0
        %911 = vmatprep.mubr.f32.mxu0 0.0
        %912 = vmatmul.mubr.f32.gmra.mxu0 %v839
        %v913 = vpop.f32.mrf.mxu0
        %v914 = vadd.f32 %v834, %v913
        %v915 = vpop.f32.mrf.mxu0
        %v916 = vadd.f32 %v836, %v915
        %917 = vdwg.mxu0
        %s918 = scalar_lea.vmem [#allocation5], 8
        %v919 = vld [vmem:[%s918] sm:$0xf]
        %v921 = vsel %vm485, %v919, 0
        %v924 = vsel %vm489, %v753, 0
        %v927 = vsel %vm489, %v754, 0
        %929 = vmatprep.subr.mxu0 0.0
        %930 = vmatpush1.msra.mxu0 0.0
        %931 = vmatprep.subr.mxu0 0.0
        %932 = vmatpush1.msra.mxu0 0.0
        %933 = vmatprep.subr.mxu0 0.0
        %934 = vmatpush1.msra.mxu0 0.0
        %935 = vmatprep.subr.mxu0 0.0
        %936 = vmatpush1.msra.mxu0 0.0
        %937 = vmatprep.subr.mxu0 0.0
        %938 = vmatpush1.msra.mxu0 0.0
        %939 = vmatprep.subr.mxu0 0.0
        %940 = vmatpush1.msra.mxu0 0.0
        %941 = vmatprep.subr.mxu0 0.0
        %942 = vmatpush1.msra.mxu0 0.0
        %943 = vmatprep.subr.mxu0 0.0
        %944 = vmatpush1.msra.mxu0 0.0
        %945 = vmatprep.subr.mxu0 0.0
        %946 = vmatpush1.msra.mxu0 0.0
        %947 = vmatprep.subr.mxu0 0.0
        %948 = vmatpush1.msra.mxu0 0.0
        %949 = vmatprep.subr.mxu0 0.0
        %950 = vmatpush1.msra.mxu0 0.0
        %951 = vmatprep.subr.mxu0 0.0
        %952 = vmatpush1.msra.mxu0 0.0
        %953 = vmatprep.subr.mxu0 0.0
        %954 = vmatpush1.msra.mxu0 0.0
        %955 = vmatprep.subr.mxu0 0.0
        %956 = vmatpush1.msra.mxu0 0.0
        %957 = vmatprep.subr.mxu0 0.0
        %958 = vmatpush1.msra.mxu0 0.0
        %959 = vmatprep.subr.mxu0 %v927
        %960 = vmatpush1.msra.mxu0 %v924
        %961 = vmatprep.subr.mxu0 0.0
        %962 = vmatpush2.msra.mxu0 0.0
        %963 = vmatprep.subr.mxu0 0.0
        %964 = vmatpush2.msra.mxu0 0.0
        %965 = vmatprep.subr.mxu0 0.0
        %966 = vmatpush2.msra.mxu0 0.0
        %967 = vmatprep.subr.mxu0 0.0
        %968 = vmatpush2.msra.mxu0 0.0
        %969 = vmatprep.subr.mxu0 0.0
        %970 = vmatpush2.msra.mxu0 0.0
        %971 = vmatprep.subr.mxu0 0.0
        %972 = vmatpush2.msra.mxu0 0.0
        %973 = vmatprep.subr.mxu0 0.0
        %974 = vmatpush2.msra.mxu0 0.0
        %975 = vmatprep.subr.mxu0 0.0
        %976 = vmatpush2.msra.mxu0 0.0
        %977 = vmatprep.subr.mxu0 0.0
        %978 = vmatpush2.msra.mxu0 0.0
        %979 = vmatprep.subr.mxu0 0.0
        %980 = vmatpush2.msra.mxu0 0.0
        %981 = vmatprep.subr.mxu0 0.0
        %982 = vmatpush2.msra.mxu0 0.0
        %983 = vmatprep.subr.mxu0 0.0
        %984 = vmatpush2.msra.mxu0 0.0
        %985 = vmatprep.subr.mxu0 0.0
        %986 = vmatpush2.msra.mxu0 0.0
        %987 = vmatprep.subr.mxu0 0.0
        %988 = vmatpush2.msra.mxu0 0.0
        %989 = vmatprep.subr.mxu0 0.0
        %990 = vmatpush2.msra.mxu0 0.0
        %991 = vmatprep.subr.mxu0 0.0
        %992 = vmatpush2.msra.mxu0 0.0
        %993 = vmatprep.mubr.f32.mxu0 0.0
        %994 = vmatmul.mubr.f32.gmra.mxu0 %v921
        %v995 = vpop.f32.mrf.mxu0
        %v996 = vadd.f32 0.0, %v995
        %v997 = vpop.f32.mrf.mxu0
        %v998 = vadd.f32 0.0, %v997
        %999 = vdwg.mxu0
        %v1000 = vadd.f32 %v914, %v996
        %v1001 = vadd.f32 %v916, %v998
        %v1002 = vld [vmem:[%s5] sm:$0xf]
        %1004 = vset.pattern.permute.xlu0 0
        %1005 = vperm.xlu0 %1004, %v1002
        %v1006 = vpop.permute.xlu0 %1005
        %v1008 = vmul.f32 %v1000, %v1006
        %v1009 = vmul.f32 %v1001, %v1006
        %v1010 = vld [vmem:[%s6] sm:$0xf]
        %1012 = vset.pattern.permute.xlu0 0
        %1013 = vperm.xlu0 %1012, %v1010
        %v1014 = vpop.permute.xlu0 %1013
        %v1016 = vadd.f32 %v1008, %v1014
        %v1017 = vadd.f32 %v1009, %v1014
        %v1018 = vmax.f32 %v1016, 0.0
        %v1019 = vmax.f32 %v1017, 0.0
        %1020 = vrot.lane.b32.xlu0 %v1018, 16
        %v1021 = vpop.permute.xlu0 %1020
        %1022 = vrot.lane.b32.xlu0 %v1019, 16
        %v1023 = vpop.permute.xlu0 %1022
        %v1024 = vsel %vm460, %v1021, %v1023
        %v1025 = vsel %vm460, %v1023, %v1021
        %v1026 = vsel %vm465, %v1025, 0.0
        %v1027 = vsel %vm466, %v1024, 0.0
        %1028 = vrot.lane.b32.xlu0 %v1018, 112
        %v1029 = vpop.permute.xlu0 %1028
        %1030 = vrot.lane.b32.xlu0 %v1019, 112
        %v1031 = vpop.permute.xlu0 %1030
        %v1032 = vsel %vm473, %v1029, %v1031
        %v1033 = vsel %vm473, %v1031, %v1029
        %v1034 = vsel %vm478, %v1032, 0.0
        %v1035 = vsel %vm479, %v1033, 0.0
        %v1036 = vld [vmem:[#allocation7] sm:$0xf]
        %s1037 = scalar_lea.vmem [#allocation7], 4
        %v1038 = vld [vmem:[%s1037] sm:$0xf]
        %v1040 = vsel %vm485, %v1038, 0
        %v1043 = vsel %vm489, %v1018, 0
        %v1046 = vsel %vm489, %v1019, 0
        %1048 = vmatprep.subr.mxu0 0.0
        %1049 = vmatpush1.msra.mxu0 0.0
        %1050 = vmatprep.subr.mxu0 0.0
        %1051 = vmatpush1.msra.mxu0 0.0
        %1052 = vmatprep.subr.mxu0 0.0
        %1053 = vmatpush1.msra.mxu0 0.0
        %1054 = vmatprep.subr.mxu0 0.0
        %1055 = vmatpush1.msra.mxu0 0.0
        %1056 = vmatprep.subr.mxu0 0.0
        %1057 = vmatpush1.msra.mxu0 0.0
        %1058 = vmatprep.subr.mxu0 0.0
        %1059 = vmatpush1.msra.mxu0 0.0
        %1060 = vmatprep.subr.mxu0 0.0
        %1061 = vmatpush1.msra.mxu0 0.0
        %1062 = vmatprep.subr.mxu0 0.0
        %1063 = vmatpush1.msra.mxu0 0.0
        %1064 = vmatprep.subr.mxu0 0.0
        %1065 = vmatpush1.msra.mxu0 0.0
        %1066 = vmatprep.subr.mxu0 0.0
        %1067 = vmatpush1.msra.mxu0 0.0
        %1068 = vmatprep.subr.mxu0 0.0
        %1069 = vmatpush1.msra.mxu0 0.0
        %1070 = vmatprep.subr.mxu0 0.0
        %1071 = vmatpush1.msra.mxu0 0.0
        %1072 = vmatprep.subr.mxu0 0.0
        %1073 = vmatpush1.msra.mxu0 0.0
        %1074 = vmatprep.subr.mxu0 0.0
        %1075 = vmatpush1.msra.mxu0 0.0
        %1076 = vmatprep.subr.mxu0 0.0
        %1077 = vmatpush1.msra.mxu0 0.0
        %1078 = vmatprep.subr.mxu0 %v1046
        %1079 = vmatpush1.msra.mxu0 %v1043
        %1080 = vmatprep.subr.mxu0 0.0
        %1081 = vmatpush2.msra.mxu0 0.0
        %1082 = vmatprep.subr.mxu0 0.0
        %1083 = vmatpush2.msra.mxu0 0.0
        %1084 = vmatprep.subr.mxu0 0.0
        %1085 = vmatpush2.msra.mxu0 0.0
        %1086 = vmatprep.subr.mxu0 0.0
        %1087 = vmatpush2.msra.mxu0 0.0
        %1088 = vmatprep.subr.mxu0 0.0
        %1089 = vmatpush2.msra.mxu0 0.0
        %1090 = vmatprep.subr.mxu0 0.0
        %1091 = vmatpush2.msra.mxu0 0.0
        %1092 = vmatprep.subr.mxu0 0.0
        %1093 = vmatpush2.msra.mxu0 0.0
        %1094 = vmatprep.subr.mxu0 0.0
        %1095 = vmatpush2.msra.mxu0 0.0
        %1096 = vmatprep.subr.mxu0 0.0
        %1097 = vmatpush2.msra.mxu0 0.0
        %1098 = vmatprep.subr.mxu0 0.0
        %1099 = vmatpush2.msra.mxu0 0.0
        %1100 = vmatprep.subr.mxu0 0.0
        %1101 = vmatpush2.msra.mxu0 0.0
        %1102 = vmatprep.subr.mxu0 0.0
        %1103 = vmatpush2.msra.mxu0 0.0
        %1104 = vmatprep.subr.mxu0 0.0
        %1105 = vmatpush2.msra.mxu0 0.0
        %1106 = vmatprep.subr.mxu0 0.0
        %1107 = vmatpush2.msra.mxu0 0.0
        %1108 = vmatprep.subr.mxu0 0.0
        %1109 = vmatpush2.msra.mxu0 0.0
        %1110 = vmatprep.subr.mxu0 0.0
        %1111 = vmatpush2.msra.mxu0 0.0
        %1112 = vmatprep.mubr.f32.mxu0 0.0
        %1113 = vmatmul.mubr.f32.gmra.mxu0 %v1040
        %v1114 = vpop.f32.mrf.mxu0
        %v1115 = vadd.f32 0.0, %v1114
        %v1116 = vpop.f32.mrf.mxu0
        %v1117 = vadd.f32 0.0, %v1116
        %1118 = vdwg.mxu0
        %v1120 = vsel %vm485, %v1036, 0
        %v1123 = vsel %vm489, %v1026, 0
        %v1126 = vsel %vm489, %v1027, 0
        %1128 = vmatprep.subr.mxu0 0.0
        %1129 = vmatpush1.msra.mxu0 0.0
        %1130 = vmatprep.subr.mxu0 0.0
        %1131 = vmatpush1.msra.mxu0 0.0
        %1132 = vmatprep.subr.mxu0 0.0
        %1133 = vmatpush1.msra.mxu0 0.0
        %1134 = vmatprep.subr.mxu0 0.0
        %1135 = vmatpush1.msra.mxu0 0.0
        %1136 = vmatprep.subr.mxu0 0.0
        %1137 = vmatpush1.msra.mxu0 0.0
        %1138 = vmatprep.subr.mxu0 0.0
        %1139 = vmatpush1.msra.mxu0 0.0
        %1140 = vmatprep.subr.mxu0 0.0
        %1141 = vmatpush1.msra.mxu0 0.0
        %1142 = vmatprep.subr.mxu0 0.0
        %1143 = vmatpush1.msra.mxu0 0.0
        %1144 = vmatprep.subr.mxu0 0.0
        %1145 = vmatpush1.msra.mxu0 0.0
        %1146 = vmatprep.subr.mxu0 0.0
        %1147 = vmatpush1.msra.mxu0 0.0
        %1148 = vmatprep.subr.mxu0 0.0
        %1149 = vmatpush1.msra.mxu0 0.0
        %1150 = vmatprep.subr.mxu0 0.0
        %1151 = vmatpush1.msra.mxu0 0.0
        %1152 = vmatprep.subr.mxu0 0.0
        %1153 = vmatpush1.msra.mxu0 0.0
        %1154 = vmatprep.subr.mxu0 0.0
        %1155 = vmatpush1.msra.mxu0 0.0
        %1156 = vmatprep.subr.mxu0 0.0
        %1157 = vmatpush1.msra.mxu0 0.0
        %1158 = vmatprep.subr.mxu0 %v1126
        %1159 = vmatpush1.msra.mxu0 %v1123
        %1160 = vmatprep.subr.mxu0 0.0
        %1161 = vmatpush2.msra.mxu0 0.0
        %1162 = vmatprep.subr.mxu0 0.0
        %1163 = vmatpush2.msra.mxu0 0.0
        %1164 = vmatprep.subr.mxu0 0.0
        %1165 = vmatpush2.msra.mxu0 0.0
        %1166 = vmatprep.subr.mxu0 0.0
        %1167 = vmatpush2.msra.mxu0 0.0
        %1168 = vmatprep.subr.mxu0 0.0
        %1169 = vmatpush2.msra.mxu0 0.0
        %1170 = vmatprep.subr.mxu0 0.0
        %1171 = vmatpush2.msra.mxu0 0.0
        %1172 = vmatprep.subr.mxu0 0.0
        %1173 = vmatpush2.msra.mxu0 0.0
        %1174 = vmatprep.subr.mxu0 0.0
        %1175 = vmatpush2.msra.mxu0 0.0
        %1176 = vmatprep.subr.mxu0 0.0
        %1177 = vmatpush2.msra.mxu0 0.0
        %1178 = vmatprep.subr.mxu0 0.0
        %1179 = vmatpush2.msra.mxu0 0.0
        %1180 = vmatprep.subr.mxu0 0.0
        %1181 = vmatpush2.msra.mxu0 0.0
        %1182 = vmatprep.subr.mxu0 0.0
        %1183 = vmatpush2.msra.mxu0 0.0
        %1184 = vmatprep.subr.mxu0 0.0
        %1185 = vmatpush2.msra.mxu0 0.0
        %1186 = vmatprep.subr.mxu0 0.0
        %1187 = vmatpush2.msra.mxu0 0.0
        %1188 = vmatprep.subr.mxu0 0.0
        %1189 = vmatpush2.msra.mxu0 0.0
        %1190 = vmatprep.subr.mxu0 0.0
        %1191 = vmatpush2.msra.mxu0 0.0
        %1192 = vmatprep.mubr.f32.mxu0 0.0
        %1193 = vmatmul.mubr.f32.gmra.mxu0 %v1120
        %v1194 = vpop.f32.mrf.mxu0
        %v1195 = vadd.f32 %v1115, %v1194
        %v1196 = vpop.f32.mrf.mxu0
        %v1197 = vadd.f32 %v1117, %v1196
        %1198 = vdwg.mxu0
        %s1199 = scalar_lea.vmem [#allocation7], 8
        %v1200 = vld [vmem:[%s1199] sm:$0xf]
        %v1202 = vsel %vm485, %v1200, 0
        %v1205 = vsel %vm489, %v1034, 0
        %v1208 = vsel %vm489, %v1035, 0
        %1210 = vmatprep.subr.mxu0 0.0
        %1211 = vmatpush1.msra.mxu0 0.0
        %1212 = vmatprep.subr.mxu0 0.0
        %1213 = vmatpush1.msra.mxu0 0.0
        %1214 = vmatprep.subr.mxu0 0.0
        %1215 = vmatpush1.msra.mxu0 0.0
        %1216 = vmatprep.subr.mxu0 0.0
        %1217 = vmatpush1.msra.mxu0 0.0
        %1218 = vmatprep.subr.mxu0 0.0
        %1219 = vmatpush1.msra.mxu0 0.0
        %1220 = vmatprep.subr.mxu0 0.0
        %1221 = vmatpush1.msra.mxu0 0.0
        %1222 = vmatprep.subr.mxu0 0.0
        %1223 = vmatpush1.msra.mxu0 0.0
        %1224 = vmatprep.subr.mxu0 0.0
        %1225 = vmatpush1.msra.mxu0 0.0
        %1226 = vmatprep.subr.mxu0 0.0
        %1227 = vmatpush1.msra.mxu0 0.0
        %1228 = vmatprep.subr.mxu0 0.0
        %1229 = vmatpush1.msra.mxu0 0.0
        %1230 = vmatprep.subr.mxu0 0.0
        %1231 = vmatpush1.msra.mxu0 0.0
        %1232 = vmatprep.subr.mxu0 0.0
        %1233 = vmatpush1.msra.mxu0 0.0
        %1234 = vmatprep.subr.mxu0 0.0
        %1235 = vmatpush1.msra.mxu0 0.0
        %1236 = vmatprep.subr.mxu0 0.0
        %1237 = vmatpush1.msra.mxu0 0.0
        %1238 = vmatprep.subr.mxu0 0.0
        %1239 = vmatpush1.msra.mxu0 0.0
        %1240 = vmatprep.subr.mxu0 %v1208
        %1241 = vmatpush1.msra.mxu0 %v1205
        %1242 = vmatprep.subr.mxu0 0.0
        %1243 = vmatpush2.msra.mxu0 0.0
        %1244 = vmatprep.subr.mxu0 0.0
        %1245 = vmatpush2.msra.mxu0 0.0
        %1246 = vmatprep.subr.mxu0 0.0
        %1247 = vmatpush2.msra.mxu0 0.0
        %1248 = vmatprep.subr.mxu0 0.0
        %1249 = vmatpush2.msra.mxu0 0.0
        %1250 = vmatprep.subr.mxu0 0.0
        %1251 = vmatpush2.msra.mxu0 0.0
        %1252 = vmatprep.subr.mxu0 0.0
        %1253 = vmatpush2.msra.mxu0 0.0
        %1254 = vmatprep.subr.mxu0 0.0
        %1255 = vmatpush2.msra.mxu0 0.0
        %1256 = vmatprep.subr.mxu0 0.0
        %1257 = vmatpush2.msra.mxu0 0.0
        %1258 = vmatprep.subr.mxu0 0.0
        %1259 = vmatpush2.msra.mxu0 0.0
        %1260 = vmatprep.subr.mxu0 0.0
        %1261 = vmatpush2.msra.mxu0 0.0
        %1262 = vmatprep.subr.mxu0 0.0
        %1263 = vmatpush2.msra.mxu0 0.0
        %1264 = vmatprep.subr.mxu0 0.0
        %1265 = vmatpush2.msra.mxu0 0.0
        %1266 = vmatprep.subr.mxu0 0.0
        %1267 = vmatpush2.msra.mxu0 0.0
        %1268 = vmatprep.subr.mxu0 0.0
        %1269 = vmatpush2.msra.mxu0 0.0
        %1270 = vmatprep.subr.mxu0 0.0
        %1271 = vmatpush2.msra.mxu0 0.0
        %1272 = vmatprep.subr.mxu0 0.0
        %1273 = vmatpush2.msra.mxu0 0.0
        %1274 = vmatprep.mubr.f32.mxu0 0.0
        %1275 = vmatmul.mubr.f32.gmra.mxu0 %v1202
        %v1276 = vpop.f32.mrf.mxu0
        %v1277 = vadd.f32 0.0, %v1276
        %v1278 = vpop.f32.mrf.mxu0
        %v1279 = vadd.f32 0.0, %v1278
        %1280 = vdwg.mxu0
        %v1281 = vadd.f32 %v1195, %v1277
        %v1282 = vadd.f32 %v1197, %v1279
        %1283 = vrot.lane.b32.xlu0 %v1281, 1
        %v1284 = vpop.permute.xlu0 %1283
        %1285 = vrot.lane.b32.xlu0 %v1282, 1
        %v1286 = vpop.permute.xlu0 %1285
        %v1287 = vsel %vm733, %v1284, %v1286
        %v1288 = vsel %vm733, %v1286, %v1284
        %v1289 = vsel %vm738, %v1288, 0.0
        %v1290 = vsel %vm739, %v1287, 0.0
        %1291 = vrot.lane.b32.xlu0 %v1281, 127
        %v1292 = vpop.permute.xlu0 %1291
        %1293 = vrot.lane.b32.xlu0 %v1282, 127
        %v1294 = vpop.permute.xlu0 %1293
        %v1295 = vsel %vm746, %v1292, %v1294
        %v1296 = vsel %vm746, %v1294, %v1292
        %v1297 = vsel %vm751, %v1295, 0.0
        %v1298 = vsel %vm752, %v1296, 0.0
        %v1299 = vld [vmem:[#allocation8] sm:$0xf]
        %s1300 = scalar_lea.vmem [#allocation8], 4
        %v1301 = vld [vmem:[%s1300] sm:$0xf]
        %v1303 = vsel %vm485, %v1301, 0
        %v1306 = vsel %vm489, %v1281, 0
        %v1309 = vsel %vm489, %v1282, 0
        %1311 = vmatprep.subr.mxu0 0.0
        %1312 = vmatpush1.msra.mxu0 0.0
        %1313 = vmatprep.subr.mxu0 0.0
        %1314 = vmatpush1.msra.mxu0 0.0
        %1315 = vmatprep.subr.mxu0 0.0
        %1316 = vmatpush1.msra.mxu0 0.0
        %1317 = vmatprep.subr.mxu0 0.0
        %1318 = vmatpush1.msra.mxu0 0.0
        %1319 = vmatprep.subr.mxu0 0.0
        %1320 = vmatpush1.msra.mxu0 0.0
        %1321 = vmatprep.subr.mxu0 0.0
        %1322 = vmatpush1.msra.mxu0 0.0
        %1323 = vmatprep.subr.mxu0 0.0
        %1324 = vmatpush1.msra.mxu0 0.0
        %1325 = vmatprep.subr.mxu0 0.0
        %1326 = vmatpush1.msra.mxu0 0.0
        %1327 = vmatprep.subr.mxu0 0.0
        %1328 = vmatpush1.msra.mxu0 0.0
        %1329 = vmatprep.subr.mxu0 0.0
        %1330 = vmatpush1.msra.mxu0 0.0
        %1331 = vmatprep.subr.mxu0 0.0
        %1332 = vmatpush1.msra.mxu0 0.0
        %1333 = vmatprep.subr.mxu0 0.0
        %1334 = vmatpush1.msra.mxu0 0.0
        %1335 = vmatprep.subr.mxu0 0.0
        %1336 = vmatpush1.msra.mxu0 0.0
        %1337 = vmatprep.subr.mxu0 0.0
        %1338 = vmatpush1.msra.mxu0 0.0
        %1339 = vmatprep.subr.mxu0 0.0
        %1340 = vmatpush1.msra.mxu0 0.0
        %1341 = vmatprep.subr.mxu0 %v1309
        %1342 = vmatpush1.msra.mxu0 %v1306
        %1343 = vmatprep.subr.mxu0 0.0
        %1344 = vmatpush2.msra.mxu0 0.0
        %1345 = vmatprep.subr.mxu0 0.0
        %1346 = vmatpush2.msra.mxu0 0.0
        %1347 = vmatprep.subr.mxu0 0.0
        %1348 = vmatpush2.msra.mxu0 0.0
        %1349 = vmatprep.subr.mxu0 0.0
        %1350 = vmatpush2.msra.mxu0 0.0
        %1351 = vmatprep.subr.mxu0 0.0
        %1352 = vmatpush2.msra.mxu0 0.0
        %1353 = vmatprep.subr.mxu0 0.0
        %1354 = vmatpush2.msra.mxu0 0.0
        %1355 = vmatprep.subr.mxu0 0.0
        %1356 = vmatpush2.msra.mxu0 0.0
        %1357 = vmatprep.subr.mxu0 0.0
        %1358 = vmatpush2.msra.mxu0 0.0
        %1359 = vmatprep.subr.mxu0 0.0
        %1360 = vmatpush2.msra.mxu0 0.0
        %1361 = vmatprep.subr.mxu0 0.0
        %1362 = vmatpush2.msra.mxu0 0.0
        %1363 = vmatprep.subr.mxu0 0.0
        %1364 = vmatpush2.msra.mxu0 0.0
        %1365 = vmatprep.subr.mxu0 0.0
        %1366 = vmatpush2.msra.mxu0 0.0
        %1367 = vmatprep.subr.mxu0 0.0
        %1368 = vmatpush2.msra.mxu0 0.0
        %1369 = vmatprep.subr.mxu0 0.0
        %1370 = vmatpush2.msra.mxu0 0.0
        %1371 = vmatprep.subr.mxu0 0.0
        %1372 = vmatpush2.msra.mxu0 0.0
        %1373 = vmatprep.subr.mxu0 0.0
        %1374 = vmatpush2.msra.mxu0 0.0
        %1375 = vmatprep.mubr.f32.mxu0 0.0
        %1376 = vmatmul.mubr.f32.gmra.mxu0 %v1303
        %v1377 = vpop.f32.mrf.mxu0
        %v1378 = vadd.f32 0.0, %v1377
        %v1379 = vpop.f32.mrf.mxu0
        %v1380 = vadd.f32 0.0, %v1379
        %1381 = vdwg.mxu0
        %v1383 = vsel %vm485, %v1299, 0
        %v1386 = vsel %vm489, %v1289, 0
        %v1389 = vsel %vm489, %v1290, 0
        %1391 = vmatprep.subr.mxu0 0.0
        %1392 = vmatpush1.msra.mxu0 0.0
        %1393 = vmatprep.subr.mxu0 0.0
        %1394 = vmatpush1.msra.mxu0 0.0
        %1395 = vmatprep.subr.mxu0 0.0
        %1396 = vmatpush1.msra.mxu0 0.0
        %1397 = vmatprep.subr.mxu0 0.0
        %1398 = vmatpush1.msra.mxu0 0.0
        %1399 = vmatprep.subr.mxu0 0.0
        %1400 = vmatpush1.msra.mxu0 0.0
        %1401 = vmatprep.subr.mxu0 0.0
        %1402 = vmatpush1.msra.mxu0 0.0
        %1403 = vmatprep.subr.mxu0 0.0
        %1404 = vmatpush1.msra.mxu0 0.0
        %1405 = vmatprep.subr.mxu0 0.0
        %1406 = vmatpush1.msra.mxu0 0.0
        %1407 = vmatprep.subr.mxu0 0.0
        %1408 = vmatpush1.msra.mxu0 0.0
        %1409 = vmatprep.subr.mxu0 0.0
        %1410 = vmatpush1.msra.mxu0 0.0
        %1411 = vmatprep.subr.mxu0 0.0
        %1412 = vmatpush1.msra.mxu0 0.0
        %1413 = vmatprep.subr.mxu0 0.0
        %1414 = vmatpush1.msra.mxu0 0.0
        %1415 = vmatprep.subr.mxu0 0.0
        %1416 = vmatpush1.msra.mxu0 0.0
        %1417 = vmatprep.subr.mxu0 0.0
        %1418 = vmatpush1.msra.mxu0 0.0
        %1419 = vmatprep.subr.mxu0 0.0
        %1420 = vmatpush1.msra.mxu0 0.0
        %1421 = vmatprep.subr.mxu0 %v1389
        %1422 = vmatpush1.msra.mxu0 %v1386
        %1423 = vmatprep.subr.mxu0 0.0
        %1424 = vmatpush2.msra.mxu0 0.0
        %1425 = vmatprep.subr.mxu0 0.0
        %1426 = vmatpush2.msra.mxu0 0.0
        %1427 = vmatprep.subr.mxu0 0.0
        %1428 = vmatpush2.msra.mxu0 0.0
        %1429 = vmatprep.subr.mxu0 0.0
        %1430 = vmatpush2.msra.mxu0 0.0
        %1431 = vmatprep.subr.mxu0 0.0
        %1432 = vmatpush2.msra.mxu0 0.0
        %1433 = vmatprep.subr.mxu0 0.0
        %1434 = vmatpush2.msra.mxu0 0.0
        %1435 = vmatprep.subr.mxu0 0.0
        %1436 = vmatpush2.msra.mxu0 0.0
        %1437 = vmatprep.subr.mxu0 0.0
        %1438 = vmatpush2.msra.mxu0 0.0
        %1439 = vmatprep.subr.mxu0 0.0
        %1440 = vmatpush2.msra.mxu0 0.0
        %1441 = vmatprep.subr.mxu0 0.0
        %1442 = vmatpush2.msra.mxu0 0.0
        %1443 = vmatprep.subr.mxu0 0.0
        %1444 = vmatpush2.msra.mxu0 0.0
        %1445 = vmatprep.subr.mxu0 0.0
        %1446 = vmatpush2.msra.mxu0 0.0
        %1447 = vmatprep.subr.mxu0 0.0
        %1448 = vmatpush2.msra.mxu0 0.0
        %1449 = vmatprep.subr.mxu0 0.0
        %1450 = vmatpush2.msra.mxu0 0.0
        %1451 = vmatprep.subr.mxu0 0.0
        %1452 = vmatpush2.msra.mxu0 0.0
        %1453 = vmatprep.subr.mxu0 0.0
        %1454 = vmatpush2.msra.mxu0 0.0
        %1455 = vmatprep.mubr.f32.mxu0 0.0
        %1456 = vmatmul.mubr.f32.gmra.mxu0 %v1383
        %v1457 = vpop.f32.mrf.mxu0
        %v1458 = vadd.f32 %v1378, %v1457
        %v1459 = vpop.f32.mrf.mxu0
        %v1460 = vadd.f32 %v1380, %v1459
        %1461 = vdwg.mxu0
        %s1462 = scalar_lea.vmem [#allocation8], 8
        %v1463 = vld [vmem:[%s1462] sm:$0xf]
        %v1465 = vsel %vm485, %v1463, 0
        %v1468 = vsel %vm489, %v1297, 0
        %v1471 = vsel %vm489, %v1298, 0
        %1473 = vmatprep.subr.mxu0 0.0
        %1474 = vmatpush1.msra.mxu0 0.0
        %1475 = vmatprep.subr.mxu0 0.0
        %1476 = vmatpush1.msra.mxu0 0.0
        %1477 = vmatprep.subr.mxu0 0.0
        %1478 = vmatpush1.msra.mxu0 0.0
        %1479 = vmatprep.subr.mxu0 0.0
        %1480 = vmatpush1.msra.mxu0 0.0
        %1481 = vmatprep.subr.mxu0 0.0
        %1482 = vmatpush1.msra.mxu0 0.0
        %1483 = vmatprep.subr.mxu0 0.0
        %1484 = vmatpush1.msra.mxu0 0.0
        %1485 = vmatprep.subr.mxu0 0.0
        %1486 = vmatpush1.msra.mxu0 0.0
        %1487 = vmatprep.subr.mxu0 0.0
        %1488 = vmatpush1.msra.mxu0 0.0
        %1489 = vmatprep.subr.mxu0 0.0
        %1490 = vmatpush1.msra.mxu0 0.0
        %1491 = vmatprep.subr.mxu0 0.0
        %1492 = vmatpush1.msra.mxu0 0.0
        %1493 = vmatprep.subr.mxu0 0.0
        %1494 = vmatpush1.msra.mxu0 0.0
        %1495 = vmatprep.subr.mxu0 0.0
        %1496 = vmatpush1.msra.mxu0 0.0
        %1497 = vmatprep.subr.mxu0 0.0
        %1498 = vmatpush1.msra.mxu0 0.0
        %1499 = vmatprep.subr.mxu0 0.0
        %1500 = vmatpush1.msra.mxu0 0.0
        %1501 = vmatprep.subr.mxu0 0.0
        %1502 = vmatpush1.msra.mxu0 0.0
        %1503 = vmatprep.subr.mxu0 %v1471
        %1504 = vmatpush1.msra.mxu0 %v1468
        %1505 = vmatprep.subr.mxu0 0.0
        %1506 = vmatpush2.msra.mxu0 0.0
        %1507 = vmatprep.subr.mxu0 0.0
        %1508 = vmatpush2.msra.mxu0 0.0
        %1509 = vmatprep.subr.mxu0 0.0
        %1510 = vmatpush2.msra.mxu0 0.0
        %1511 = vmatprep.subr.mxu0 0.0
        %1512 = vmatpush2.msra.mxu0 0.0
        %1513 = vmatprep.subr.mxu0 0.0
        %1514 = vmatpush2.msra.mxu0 0.0
        %1515 = vmatprep.subr.mxu0 0.0
        %1516 = vmatpush2.msra.mxu0 0.0
        %1517 = vmatprep.subr.mxu0 0.0
        %1518 = vmatpush2.msra.mxu0 0.0
        %1519 = vmatprep.subr.mxu0 0.0
        %1520 = vmatpush2.msra.mxu0 0.0
        %1521 = vmatprep.subr.mxu0 0.0
        %1522 = vmatpush2.msra.mxu0 0.0
        %1523 = vmatprep.subr.mxu0 0.0
        %1524 = vmatpush2.msra.mxu0 0.0
        %1525 = vmatprep.subr.mxu0 0.0
        %1526 = vmatpush2.msra.mxu0 0.0
        %1527 = vmatprep.subr.mxu0 0.0
        %1528 = vmatpush2.msra.mxu0 0.0
        %1529 = vmatprep.subr.mxu0 0.0
        %1530 = vmatpush2.msra.mxu0 0.0
        %1531 = vmatprep.subr.mxu0 0.0
        %1532 = vmatpush2.msra.mxu0 0.0
        %1533 = vmatprep.subr.mxu0 0.0
        %1534 = vmatpush2.msra.mxu0 0.0
        %1535 = vmatprep.subr.mxu0 0.0
        %1536 = vmatpush2.msra.mxu0 0.0
        %1537 = vmatprep.mubr.f32.mxu0 0.0
        %1538 = vmatmul.mubr.f32.gmra.mxu0 %v1465
        %v1539 = vpop.f32.mrf.mxu0
        %v1540 = vadd.f32 0.0, %v1539
        %v1541 = vpop.f32.mrf.mxu0
        %v1542 = vadd.f32 0.0, %v1541
        %1543 = vdwg.mxu0
        %v1544 = vadd.f32 %v1458, %v1540
        %v1545 = vadd.f32 %v1460, %v1542
        %v1546 = vld [vmem:[%s7] sm:$0xf]
        %1548 = vset.pattern.permute.xlu0 0
        %1549 = vperm.xlu0 %1548, %v1546
        %v1550 = vpop.permute.xlu0 %1549
        %v1552 = vmul.f32 %v1544, %v1550
        %v1553 = vmul.f32 %v1545, %v1550
        %v1554 = vld [vmem:[%s8] sm:$0xf]
        %1556 = vset.pattern.permute.xlu0 0
        %1557 = vperm.xlu0 %1556, %v1554
        %v1558 = vpop.permute.xlu0 %1557
        %v1560 = vadd.f32 %v1552, %v1558
        %v1561 = vadd.f32 %v1553, %v1558
        %v1562 = vadd.f32 %v1560, %v452
        %v1563 = vadd.f32 %v1561, %v454
        %v1564 = vmax.f32 %v1562, 0.0
        %v1565 = vmax.f32 %v1563, 0.0
        %v1568 = vcombine.low %v1564, %v1565
        %1570 = vst [vmem:[%s385] sm:$0xff] %v1568
        %s1571 = sand.u32 %s228, 1
        %s1572 = scalar_lea.sflag [#allocation4], %s1571
        %s1573 = sand.u32 %s228, 1
        %s1574 = smul.addr %s1573, 8
        %s1575 = scalar_lea.vmem [#allocation10], %s1574
        // Predicated region
        $region73: #{tpu_custom_call.1} parent=55 // pred_check
          %p1576 = pneg %p238
        $region74: #{tpu_custom_call.1} parent=55 // pred_check_branch
          %1578 = sbr.rel (%p1576) target = $region76
        $region75: #{tpu_custom_call.1} parent=55 // pred_region
          %s1579 = smul.u32 2, %s26
          %s1581 = ssub.s32 128, 128
          %1582 = vsyncadd %s1572, %s1581
          %s1583 = smul.addr %s1579, 64
          %s1584 = scalar_lea.hbm %s9, %s1583
          %s1586 = sshll.u32 %s1575, 4
          %s1587 = int_to_ptr.vmem [resolvable:$true] %s1586
          %1589 = dma.vmem_to_hbm [thread:$0]  %s1587, 128, %s1584, %s1572
        $region76: #{tpu_custom_call.1} parent=55 // pred_fallthru
          _
      $region56: #{tpu_custom_call.1} parent=5 // pred_fallthru
        _
      %p1590 = scmp.le.s32.totalorder 2, %s21
      // Predicated region
      $region77: #{tpu_custom_call.1} parent=5 // pred_check
        %p1591 = pneg %p1590
      $region78: #{tpu_custom_call.1} parent=5 // pred_check_branch
        %1593 = sbr.rel (%p1591) target = $region80
      $region79: #{tpu_custom_call.1} parent=5 // pred_region
        %s1594 = ssub.s32 %s21, 2
        // Predicated region
        $region81: #{tpu_custom_call.1} parent=79 // pred_check
          %p1595 = pneg %p244
        $region82: #{tpu_custom_call.1} parent=79 // pred_check_branch
          %1597 = sbr.rel (%p1595) target = $region84
        $region83: #{tpu_custom_call.1} parent=79 // pred_region
          %s1598 = sand.u32 %s229, 1
          %s1599 = scalar_lea.sflag [#allocation4], %s1598
          %s1600 = sand.u32 %s229, 1
          %s1601 = smul.addr %s1600, 8
          %s1602 = scalar_lea.vmem [#allocation10], %s1601
          %1603 = dma.done %s1599, 128
        $region84: #{tpu_custom_call.1} parent=79 // pred_fallthru
          _
      $region80: #{tpu_custom_call.1} parent=5 // pred_fallthru
        _
    $region6: #{tpu_custom_call.1} parent=1 // loop_footer
      %s25 = sadd.s32 1, %s21
    $region7: #{tpu_custom_call.1} parent=1 // loop_footer_branch
      %20 = sbr.rel target = $region3
    $region8: #{tpu_custom_call.1} parent=1 // loop_exit
      _
    %1604 = vsyncpa [#allocation3], 1
    %s1605 = scalar_lea.sflag [#allocation3], 1
    %1606 = vsyncpa %s1605, 1
    %1607 = vsyncpa [#allocation6], 1
    %1608 = vsyncpa [#allocation9], 1
    %1609 = vsyncpa [#allocation4], 1
    %s1610 = scalar_lea.sflag [#allocation4], 1
    %1611 = vsyncpa %s1610, 1

</llo_original>
